<compile_context>
chip_gen: v7x
topology: tpu7x:2x2x1
jax: 0.10.0
libtpu: 0.0.40
codegen_flags: <defaults>
</compile_context>

<pallas_src>
import functools

import jax
import jax.numpy as jnp
from jax.experimental import pallas as pl
from jax.experimental.pallas import tpu as pltpu


# ----------------------------------------------------------------------------
# Tiled matmul + bias kernel:  out = x @ w + b    (f32 accumulation)
# Used for the hoisted input projection and the tied output projection.
# ----------------------------------------------------------------------------
def _matmul_bias_kernel(x_ref, w_ref, b_ref, o_ref, acc_ref):
    k = pl.program_id(2)

    @pl.when(k == 0)
    def _():
        acc_ref[...] = jnp.zeros_like(acc_ref)

    acc_ref[...] += jnp.dot(x_ref[...], w_ref[...],
                            preferred_element_type=jnp.float32)

    @pl.when(k == pl.num_programs(2) - 1)
    def _():
        o_ref[...] = (acc_ref[...] + b_ref[...]).astype(o_ref.dtype)


def _pick_tile(dim, target, base):
    """Largest tile <= target that is a multiple of `base` and divides `dim`
    (or the full dim if it's already small / nothing divides)."""
    if dim <= target:
        return dim
    t = (target // base) * base
    while t >= base:
        if dim % t == 0:
            return t
        t -= base
    return dim


def matmul_bias(x, w, b, *, bm_target=256, bn_target=512, bk_target=512):
    """x: (M, K), w: (K, N), b: (N,) f32.  Returns f32 (M, N)."""
    M, K = x.shape
    _, N = w.shape
    bm = _pick_tile(M, bm_target, 8)
    bn = _pick_tile(N, bn_target, 128)
    bk = _pick_tile(K, bk_target, 128)
    grid = (M // bm, N // bn, K // bk)
    return pl.pallas_call(
        _matmul_bias_kernel,
        out_shape=jax.ShapeDtypeStruct((M, N), jnp.float32),
        grid_spec=pltpu.PrefetchScalarGridSpec(
            num_scalar_prefetch=0,
            grid=grid,
            in_specs=[
                pl.BlockSpec((bm, bk), lambda i, j, k: (i, k)),
                pl.BlockSpec((bk, bn), lambda i, j, k: (k, j)),
                pl.BlockSpec((1, bn), lambda i, j, k: (0, j)),
            ],
            out_specs=pl.BlockSpec((bm, bn), lambda i, j, k: (i, j)),
            scratch_shapes=[pltpu.VMEM((bm, bn), jnp.float32)],
        ),
        compiler_params=pltpu.CompilerParams(
            dimension_semantics=("parallel", "parallel", "arbitrary")),
    )(x, w, b.reshape(1, -1).astype(jnp.float32))


# ----------------------------------------------------------------------------
# LSTM recurrence kernel: a CHUNK of Tc timesteps per grid step.
# Input xz is the pre-computed x@U + (BU+BW); the body only does h@W + gates.
# Cell/hidden state is carried in VMEM scratch across grid steps.
# ----------------------------------------------------------------------------
def _lstm_recurrence_kernel(xz_ref, w_ref, c0_ref, h0_ref,
                            out_ref, c_fin_ref, h_fin_ref,
                            c_sc, h_sc, *, tc, hid):
    t = pl.program_id(0)

    @pl.when(t == 0)
    def _():
        c_sc[...] = c0_ref[...]
        h_sc[...] = h0_ref[...]

    w = w_ref[...]                                   # load once per chunk
    for tt in range(tc):                             # static -> fully unrolled
        z = xz_ref[tt] + jnp.dot(h_sc[...].astype(w.dtype), w,
                                 preferred_element_type=jnp.float32)
        f = jax.nn.sigmoid(z[:, 0 * hid:1 * hid])
        i = jax.nn.sigmoid(z[:, 1 * hid:2 * hid])
        g = jnp.tanh(z[:, 2 * hid:3 * hid])
        o = jax.nn.sigmoid(z[:, 3 * hid:4 * hid])
        c_new = c_sc[...] * f + i * g
        h_new = o * jnp.tanh(c_new)
        c_sc[...] = c_new
        h_sc[...] = h_new
        out_ref[tt] = h_new

    @pl.when(t == pl.num_programs(0) - 1)
    def _():
        c_fin_ref[...] = c_sc[...]
        h_fin_ref[...] = h_sc[...]


def _chunk_len(T, target=16):
    for c in range(min(T, target), 0, -1):
        if T % c == 0:
            return c
    return 1


def lstm_recurrence(xz, W, c0, h0):
    """xz: (T, B, 4H) pre-projected input (biases already folded in).
    Returns (outputs (T,B,H) f32, c_final, h_final)."""
    T, B, H4 = xz.shape
    H = W.shape[0]
    tc = _chunk_len(T, 16)
    kernel = functools.partial(_lstm_recurrence_kernel, tc=tc, hid=H)
    out, c_fin, h_fin = pl.pallas_call(
        kernel,
        out_shape=(
            jax.ShapeDtypeStruct((T, B, H), jnp.float32),
            jax.ShapeDtypeStruct((B, H), jnp.float32),
            jax.ShapeDtypeStruct((B, H), jnp.float32),
        ),
        grid_spec=pltpu.PrefetchScalarGridSpec(
            num_scalar_prefetch=0,
            grid=(T // tc,),
            in_specs=[
                pl.BlockSpec((tc, B, H4), lambda t: (t, 0, 0)),
                pl.BlockSpec((H, H4), lambda t: (0, 0)),
                pl.BlockSpec((B, H), lambda t: (0, 0)),
                pl.BlockSpec((B, H), lambda t: (0, 0)),
            ],
            out_specs=[
                pl.BlockSpec((tc, B, H), lambda t: (t, 0, 0)),
                pl.BlockSpec((B, H), lambda t: (0, 0)),
                pl.BlockSpec((B, H), lambda t: (0, 0)),
            ],
            scratch_shapes=[
                pltpu.VMEM((B, H), jnp.float32),
                pltpu.VMEM((B, H), jnp.float32),
            ],
        ),
        compiler_params=pltpu.CompilerParams(
            dimension_semantics=("arbitrary",)),
    )(xz, W, c0, h0)
    return out, c_fin, h_fin


# ----------------------------------------------------------------------------
# PTBLM forward (tie_emb=True, adaptive=False branch)
# ----------------------------------------------------------------------------
def ptblm_forward(params, model_input, initial_states,
                  matmul_dtype=jnp.float32):
    """model_input: (B, T) int32 token ids.  Returns (logits (B,T,V), states)."""
    emb_w = params["embedding"]                          # (V, E)
    # Gather directly time-major: transpose the tiny int id matrix,
    # not the (B,T,E) activations.
    x = jnp.take(emb_w, model_input.T, axis=0)           # (T, B, E)
    c0, h0 = initial_states

    c_fin = h_fin = None
    for layer in params["lstm_layers"]:
        # dropout (rate=0.0) -> identity; each layer receives the same
        # initial_states, matching the reference LSTM.forward.
        T, B, E = x.shape
        bias = layer["BU"] + layer["BW"]                 # fold both biases
        xz = matmul_bias(x.reshape(T * B, E).astype(matmul_dtype),
                         layer["U"].astype(matmul_dtype), bias)
        xz = xz.reshape(T, B, -1)                        # (T, B, 4H) f32
        x, c_fin, h_fin = lstm_recurrence(
            xz, layer["W"].astype(matmul_dtype), c0, h0)

    T, B, H = x.shape
    logits = matmul_bias(x.reshape(T * B, H).astype(matmul_dtype),
                         emb_w.T.astype(matmul_dtype), params["tie_b"])
    # TODO(synk): could write logits directly batch-major with a 3-D out
    # BlockSpec; keeping the small glue transpose for robustness.
    logits = jnp.transpose(logits.reshape(T, B, -1), (1, 0, 2))   # (B, T, V)
    return logits, (c_fin, h_fin)


# ----------------------------------------------------------------------------
# Deterministic parameter init (mirrors PTBLM.__init__ / init_weights shapes)
# ----------------------------------------------------------------------------
def init_params(key, num_layers, emb_size, hidden_size, vocab_size,
                weight_init=0.1):
    keys = jax.random.split(key, 2 + 4 * num_layers)
    params = {
        "embedding": jax.random.uniform(
            keys[0], (vocab_size, emb_size), jnp.float32,
            -weight_init, weight_init),
        "tie_b": jax.random.uniform(
            keys[1], (vocab_size,), jnp.float32, -weight_init, weight_init),
        "lstm_layers": [],
    }
    stdv = 1.0 / (hidden_size ** 0.5)
    for l in range(num_layers):
        in_sz = emb_size if l == 0 else hidden_size
        k = keys[2 + 4 * l: 2 + 4 * (l + 1)]
        params["lstm_layers"].append({
            "U":  jax.random.uniform(k[0], (in_sz, 4 * hidden_size),
                                     jnp.float32, -stdv, stdv),
            "BU": jax.random.uniform(k[1], (4 * hidden_size,),
                                     jnp.float32, -stdv, stdv),
            "W":  jax.random.uniform(k[2], (hidden_size, 4 * hidden_size),
                                     jnp.float32, -stdv, stdv),
            "BW": jax.random.uniform(k[3], (4 * hidden_size,),
                                     jnp.float32, -stdv, stdv),
        })
    return params


# ----------------------------------------------------------------------------
# Pure-JAX reference (for correctness check)
# ----------------------------------------------------------------------------
def ptblm_forward_ref(params, model_input, initial_states):
    emb_w = params["embedding"]
    x = jnp.transpose(jnp.take(emb_w, model_input, axis=0), (1, 0, 2))
    c0, h0 = initial_states
    H = h0.shape[-1]
    c_fin = h_fin = None
    for layer in params["lstm_layers"]:
        c, h = c0, h0
        outs = []
        for t in range(x.shape[0]):
            z = (x[t] @ layer["U"] + layer["BU"]
                 + h @ layer["W"] + layer["BW"])
            f = jax.nn.sigmoid(z[:, 0 * H:1 * H])
            i = jax.nn.sigmoid(z[:, 1 * H:2 * H])
            g = jnp.tanh(z[:, 2 * H:3 * H])
            o = jax.nn.sigmoid(z[:, 3 * H:4 * H])
            c = c * f + i * g
            h = o * jnp.tanh(c)
            outs.append(h)
        x = jnp.stack(outs)
        c_fin, h_fin = c, h
    T, B, _ = x.shape
    logits = x.reshape(T * B, H) @ emb_w.T + params["tie_b"]
    logits = jnp.transpose(logits.reshape(T, B, -1), (1, 0, 2))
    return logits, (c_fin, h_fin)


if __name__ == "__main__":
    NUM_LAYERS = 2
    EMB = 32            # tie_emb=True requires emb_size == hidden_size
    HID = 32
    VOCAB = 64
    BATCH = 2
    SEQ = 8

    key = jax.random.PRNGKey(0)
    pkey, ikey = jax.random.split(key)
    params = init_params(pkey, NUM_LAYERS, EMB, HID, VOCAB)

    model_input = jax.random.randint(ikey, (BATCH, SEQ), 0, VOCAB, jnp.int32)
    initial_states = (jnp.zeros((BATCH, HID), jnp.float32),
                      jnp.zeros((BATCH, HID), jnp.float32))

    # --- strict correctness check in f32 ---
    forward_f32 = jax.jit(functools.partial(ptblm_forward,
                                            matmul_dtype=jnp.float32))
    logits, (c_fin, h_fin) = forward_f32(params, model_input, initial_states)
    jax.block_until_ready((logits, c_fin, h_fin))

    ref_logits, (ref_c, ref_h) = ptblm_forward_ref(params, model_input,
                                                   initial_states)
    assert logits.shape == (BATCH, SEQ, VOCAB)
    assert jnp.allclose(logits, ref_logits, atol=1e-4, rtol=1e-4)
    assert jnp.allclose(c_fin, ref_c, atol=1e-5, rtol=1e-5)
    assert jnp.allclose(h_fin, ref_h, atol=1e-5, rtol=1e-5)

    # --- bf16-operand path (f32 accumulation / gate math): smoke + loose check
    forward_bf16 = jax.jit(functools.partial(ptblm_forward,
                                             matmul_dtype=jnp.bfloat16))
    logits_bf16, (c_b, h_b) = forward_bf16(params, model_input, initial_states)
    jax.block_until_ready((logits_bf16, c_b, h_b))
    assert bool(jnp.all(jnp.isfinite(logits_bf16)))
    assert float(jnp.max(jnp.abs(logits_bf16 - ref_logits))) < 0.25

    print("KERNEL_OK")
</pallas_src>

<mosaic_0001>
module attributes {stable_mosaic.version = 11 : i64} {
  func.func @_matmul_bias_kernel(%arg0: i32, %arg1: i32, %arg2: i32, %arg3: memref<16x32xf32, #tpu.memory_space<vmem>>, %arg4: memref<32x64xf32, #tpu.memory_space<vmem>>, %arg5: memref<1x64xf32, #tpu.memory_space<vmem>>, %arg6: memref<16x64xf32, #tpu.memory_space<vmem>>, %arg7: memref<16x64xf32, #tpu.memory_space<vmem>>) attributes {dimension_semantics = [#tpu.dimension_semantics<parallel>, #tpu.dimension_semantics<parallel>, #tpu.dimension_semantics<arbitrary>], iteration_bounds = array<i64: 1, 1, 1>, scalar_prefetch = 0 : i64, scratch_operands = 1 : i64, tpu.core_type = #tpu.core_type<tc>, window_params = [{transform_indices = @transform_0, window_bounds = array<i64: 16, 32>}, {transform_indices = @transform_1, window_bounds = array<i64: 32, 64>}, {transform_indices = @transform_2, window_bounds = array<i64: 1, 64>}, {transform_indices = @transform_3, window_bounds = array<i64: 16, 64>}]} {
    %c0_i32 = arith.constant 0 : i32
    %0 = arith.cmpi eq, %arg2, %c0_i32 : i32
    %1 = arith.extui %0 : i1 to i32
    %c0_i32_0 = arith.constant 0 : i32
    %2 = arith.cmpi ne, %1, %c0_i32_0 : i32
    scf.if %2 {
      %cst_10 = arith.constant 0.000000e+00 : f32
      %12 = vector.broadcast %cst_10 : f32 to vector<16x64xf32>
      %c0_11 = arith.constant 0 : index
      %c0_12 = arith.constant 0 : index
      %13 = vector.load %arg7[%c0_11, %c0_12] : memref<16x64xf32, #tpu.memory_space<vmem>>, vector<16x64xf32>
      tpu.vector_store %arg7[%c0_11, %c0_12], %12 {strides = array<i32>} : memref<16x64xf32, #tpu.memory_space<vmem>>, vector<16x64xf32>,
    } else {
    }
    %c0 = arith.constant 0 : index
    %c0_1 = arith.constant 0 : index
    %3 = vector.load %arg7[%c0, %c0_1] : memref<16x64xf32, #tpu.memory_space<vmem>>, vector<16x64xf32>
    %c0_2 = arith.constant 0 : index
    %c0_3 = arith.constant 0 : index
    %4 = vector.load %arg3[%c0_2, %c0_3] : memref<16x32xf32, #tpu.memory_space<vmem>>, vector<16x32xf32>
    %c0_4 = arith.constant 0 : index
    %c0_5 = arith.constant 0 : index
    %5 = vector.load %arg4[%c0_4, %c0_5] : memref<32x64xf32, #tpu.memory_space<vmem>>, vector<32x64xf32>
    %cst = arith.constant dense<0.000000e+00> : vector<16x64xf32>
    %6 = tpu.matmul %4, %5, %cst {dimension_numbers = #tpu.dot_dimension_numbers<[1], [0], [0], [1], [0, 0, 1, 1], [], []>} : vector<16x32xf32>, vector<32x64xf32>, vector<16x64xf32> -> vector<16x64xf32>
    %7 = arith.addf %3, %6 : vector<16x64xf32>
    %c0_6 = arith.constant 0 : index
    %c0_7 = arith.constant 0 : index
    %8 = vector.load %arg7[%c0_6, %c0_7] : memref<16x64xf32, #tpu.memory_space<vmem>>, vector<16x64xf32>
    tpu.vector_store %arg7[%c0_6, %c0_7], %7 {strides = array<i32>} : memref<16x64xf32, #tpu.memory_space<vmem>>, vector<16x64xf32>,
    %c0_i32_8 = arith.constant 0 : i32
    %9 = arith.cmpi eq, %arg2, %c0_i32_8 : i32
    %10 = arith.extui %9 : i1 to i32
    %c0_i32_9 = arith.constant 0 : i32
    %11 = arith.cmpi ne, %10, %c0_i32_9 : i32
    scf.if %11 {
      %c0_10 = arith.constant 0 : index
      %c0_11 = arith.constant 0 : index
      %12 = vector.load %arg7[%c0_10, %c0_11] : memref<16x64xf32, #tpu.memory_space<vmem>>, vector<16x64xf32>
      %c0_12 = arith.constant 0 : index
      %c0_13 = arith.constant 0 : index
      %13 = vector.load %arg5[%c0_12, %c0_13] : memref<1x64xf32, #tpu.memory_space<vmem>>, vector<1x64xf32>
      %14 = vector.broadcast %13 : vector<1x64xf32> to vector<16x64xf32>
      %15 = arith.addf %12, %14 : vector<16x64xf32>
      %c0_14 = arith.constant 0 : index
      %c0_15 = arith.constant 0 : index
      %16 = vector.load %arg6[%c0_14, %c0_15] : memref<16x64xf32, #tpu.memory_space<vmem>>, vector<16x64xf32>
      tpu.vector_store %arg6[%c0_14, %c0_15], %15 {strides = array<i32>} : memref<16x64xf32, #tpu.memory_space<vmem>>, vector<16x64xf32>,
    } else {
    }
    return
  }
  func.func @transform_0(%arg0: i32, %arg1: i32, %arg2: i32) -> (i32, i32) {
    %c0_i32 = arith.constant 0 : i32
    return %arg0, %arg2 : i32, i32
  }
  func.func @transform_1(%arg0: i32, %arg1: i32, %arg2: i32) -> (i32, i32) {
    %c0_i32 = arith.constant 0 : i32
    return %arg2, %arg1 : i32, i32
  }
  func.func @transform_2(%arg0: i32, %arg1: i32, %arg2: i32) -> (i32, i32) {
    %c0_i32 = arith.constant 0 : i32
    %c0_i32_0 = arith.constant 0 : i32
    return %c0_i32, %arg1 : i32, i32
  }
  func.func @transform_3(%arg0: i32, %arg1: i32, %arg2: i32) -> (i32, i32) {
    %c0_i32 = arith.constant 0 : i32
    return %arg0, %arg1 : i32, i32
  }
}

module attributes {stable_mosaic.version = 11 : i64} {
  func.func @_matmul_bias_kernel(%arg0: i32, %arg1: i32, %arg2: i32, %arg3: memref<16x32xf32, #tpu.memory_space<vmem>>, %arg4: memref<32x128xf32, #tpu.memory_space<vmem>>, %arg5: memref<1x128xf32, #tpu.memory_space<vmem>>, %arg6: memref<16x128xf32, #tpu.memory_space<vmem>>, %arg7: memref<16x128xf32, #tpu.memory_space<vmem>>) attributes {dimension_semantics = [#tpu.dimension_semantics<parallel>, #tpu.dimension_semantics<parallel>, #tpu.dimension_semantics<arbitrary>], iteration_bounds = array<i64: 1, 1, 1>, scalar_prefetch = 0 : i64, scratch_operands = 1 : i64, tpu.core_type = #tpu.core_type<tc>, window_params = [{transform_indices = @transform_0, window_bounds = array<i64: 16, 32>}, {transform_indices = @transform_1, window_bounds = array<i64: 32, 128>}, {transform_indices = @transform_2, window_bounds = array<i64: 1, 128>}, {transform_indices = @transform_3, window_bounds = array<i64: 16, 128>}]} {
    %c0_i32 = arith.constant 0 : i32
    %0 = arith.cmpi eq, %arg2, %c0_i32 : i32
    %1 = arith.extui %0 : i1 to i32
    %c0_i32_0 = arith.constant 0 : i32
    %2 = arith.cmpi ne, %1, %c0_i32_0 : i32
    scf.if %2 {
      %cst_10 = arith.constant 0.000000e+00 : f32
      %12 = vector.broadcast %cst_10 : f32 to vector<16x128xf32>
      %c0_11 = arith.constant 0 : index
      %c0_12 = arith.constant 0 : index
      %13 = vector.load %arg7[%c0_11, %c0_12] : memref<16x128xf32, #tpu.memory_space<vmem>>, vector<16x128xf32>
      tpu.vector_store %arg7[%c0_11, %c0_12], %12 {strides = array<i32>} : memref<16x128xf32, #tpu.memory_space<vmem>>, vector<16x128xf32>,
    } else {
    }
    %c0 = arith.constant 0 : index
    %c0_1 = arith.constant 0 : index
    %3 = vector.load %arg7[%c0, %c0_1] : memref<16x128xf32, #tpu.memory_space<vmem>>, vector<16x128xf32>
    %c0_2 = arith.constant 0 : index
    %c0_3 = arith.constant 0 : index
    %4 = vector.load %arg3[%c0_2, %c0_3] : memref<16x32xf32, #tpu.memory_space<vmem>>, vector<16x32xf32>
    %c0_4 = arith.constant 0 : index
    %c0_5 = arith.constant 0 : index
    %5 = vector.load %arg4[%c0_4, %c0_5] : memref<32x128xf32, #tpu.memory_space<vmem>>, vector<32x128xf32>
    %cst = arith.constant dense<0.000000e+00> : vector<16x128xf32>
    %6 = tpu.matmul %4, %5, %cst {dimension_numbers = #tpu.dot_dimension_numbers<[1], [0], [0], [1], [0, 0, 1, 1], [], []>} : vector<16x32xf32>, vector<32x128xf32>, vector<16x128xf32> -> vector<16x128xf32>
    %7 = arith.addf %3, %6 : vector<16x128xf32>
    %c0_6 = arith.constant 0 : index
    %c0_7 = arith.constant 0 : index
    %8 = vector.load %arg7[%c0_6, %c0_7] : memref<16x128xf32, #tpu.memory_space<vmem>>, vector<16x128xf32>
    tpu.vector_store %arg7[%c0_6, %c0_7], %7 {strides = array<i32>} : memref<16x128xf32, #tpu.memory_space<vmem>>, vector<16x128xf32>,
    %c0_i32_8 = arith.constant 0 : i32
    %9 = arith.cmpi eq, %arg2, %c0_i32_8 : i32
    %10 = arith.extui %9 : i1 to i32
    %c0_i32_9 = arith.constant 0 : i32
    %11 = arith.cmpi ne, %10, %c0_i32_9 : i32
    scf.if %11 {
      %c0_10 = arith.constant 0 : index
      %c0_11 = arith.constant 0 : index
      %12 = vector.load %arg7[%c0_10, %c0_11] : memref<16x128xf32, #tpu.memory_space<vmem>>, vector<16x128xf32>
      %c0_12 = arith.constant 0 : index
      %c0_13 = arith.constant 0 : index
      %13 = vector.load %arg5[%c0_12, %c0_13] : memref<1x128xf32, #tpu.memory_space<vmem>>, vector<1x128xf32>
      %14 = vector.broadcast %13 : vector<1x128xf32> to vector<16x128xf32>
      %15 = arith.addf %12, %14 : vector<16x128xf32>
      %c0_14 = arith.constant 0 : index
      %c0_15 = arith.constant 0 : index
      %16 = vector.load %arg6[%c0_14, %c0_15] : memref<16x128xf32, #tpu.memory_space<vmem>>, vector<16x128xf32>
      tpu.vector_store %arg6[%c0_14, %c0_15], %15 {strides = array<i32>} : memref<16x128xf32, #tpu.memory_space<vmem>>, vector<16x128xf32>,
    } else {
    }
    return
  }
  func.func @transform_0(%arg0: i32, %arg1: i32, %arg2: i32) -> (i32, i32) {
    %c0_i32 = arith.constant 0 : i32
    return %arg0, %arg2 : i32, i32
  }
  func.func @transform_1(%arg0: i32, %arg1: i32, %arg2: i32) -> (i32, i32) {
    %c0_i32 = arith.constant 0 : i32
    return %arg2, %arg1 : i32, i32
  }
  func.func @transform_2(%arg0: i32, %arg1: i32, %arg2: i32) -> (i32, i32) {
    %c0_i32 = arith.constant 0 : i32
    %c0_i32_0 = arith.constant 0 : i32
    return %c0_i32, %arg1 : i32, i32
  }
  func.func @transform_3(%arg0: i32, %arg1: i32, %arg2: i32) -> (i32, i32) {
    %c0_i32 = arith.constant 0 : i32
    return %arg0, %arg1 : i32, i32
  }
}

module attributes {stable_mosaic.version = 11 : i64} {
  func.func @_lstm_recurrence_kernel(%arg0: i32, %arg1: memref<8x2x128xf32, #tpu.memory_space<vmem>>, %arg2: memref<32x128xf32, #tpu.memory_space<vmem>>, %arg3: memref<2x32xf32, #tpu.memory_space<vmem>>, %arg4: memref<2x32xf32, #tpu.memory_space<vmem>>, %arg5: memref<8x2x32xf32, #tpu.memory_space<vmem>>, %arg6: memref<2x32xf32, #tpu.memory_space<vmem>>, %arg7: memref<2x32xf32, #tpu.memory_space<vmem>>, %arg8: memref<2x32xf32, #tpu.memory_space<vmem>>, %arg9: memref<2x32xf32, #tpu.memory_space<vmem>>) attributes {dimension_semantics = [#tpu.dimension_semantics<arbitrary>], iteration_bounds = array<i64: 1>, scalar_prefetch = 0 : i64, scratch_operands = 2 : i64, tpu.core_type = #tpu.core_type<tc>, window_params = [{transform_indices = @transform_0, window_bounds = array<i64: 8, 2, 128>}, {pipeline_mode = #tpu.pipeline_mode<synchronous>, transform_indices = @transform_1, window_bounds = array<i64: 32, 128>}, {pipeline_mode = #tpu.pipeline_mode<synchronous>, transform_indices = @transform_2, window_bounds = array<i64: 2, 32>}, {pipeline_mode = #tpu.pipeline_mode<synchronous>, transform_indices = @transform_3, window_bounds = array<i64: 2, 32>}, {transform_indices = @transform_4, window_bounds = array<i64: 8, 2, 32>}, {pipeline_mode = #tpu.pipeline_mode<synchronous>, transform_indices = @transform_5, window_bounds = array<i64: 2, 32>}, {pipeline_mode = #tpu.pipeline_mode<synchronous>, transform_indices = @transform_6, window_bounds = array<i64: 2, 32>}]} {
    %c0_i32 = arith.constant 0 : i32
    %0 = arith.cmpi eq, %arg0, %c0_i32 : i32
    %1 = arith.extui %0 : i1 to i32
    %c0_i32_0 = arith.constant 0 : i32
    %2 = arith.cmpi ne, %1, %c0_i32_0 : i32
    scf.if %2 {
      %c0_140 = arith.constant 0 : index
      %c0_141 = arith.constant 0 : index
      %295 = vector.load %arg3[%c0_140, %c0_141] : memref<2x32xf32, #tpu.memory_space<vmem>>, vector<2x32xf32>
      %c0_142 = arith.constant 0 : index
      %c0_143 = arith.constant 0 : index
      %296 = vector.load %arg8[%c0_142, %c0_143] : memref<2x32xf32, #tpu.memory_space<vmem>>, vector<2x32xf32>
      tpu.vector_store %arg8[%c0_142, %c0_143], %295 {strides = array<i32>} : memref<2x32xf32, #tpu.memory_space<vmem>>, vector<2x32xf32>,
      %c0_144 = arith.constant 0 : index
      %c0_145 = arith.constant 0 : index
      %297 = vector.load %arg4[%c0_144, %c0_145] : memref<2x32xf32, #tpu.memory_space<vmem>>, vector<2x32xf32>
      %c0_146 = arith.constant 0 : index
      %c0_147 = arith.constant 0 : index
      %298 = vector.load %arg9[%c0_146, %c0_147] : memref<2x32xf32, #tpu.memory_space<vmem>>, vector<2x32xf32>
      tpu.vector_store %arg9[%c0_146, %c0_147], %297 {strides = array<i32>} : memref<2x32xf32, #tpu.memory_space<vmem>>, vector<2x32xf32>,
    } else {
    }
    %c0 = arith.constant 0 : index
    %c0_1 = arith.constant 0 : index
    %3 = vector.load %arg2[%c0, %c0_1] : memref<32x128xf32, #tpu.memory_space<vmem>>, vector<32x128xf32>
    %c0_2 = arith.constant 0 : index
    %c0_3 = arith.constant 0 : index
    %c0_4 = arith.constant 0 : index
    %4 = vector.load %arg1[%c0_2, %c0_3, %c0_4] : memref<8x2x128xf32, #tpu.memory_space<vmem>>, vector<1x2x128xf32>
    %5 = vector.shape_cast %4 : vector<1x2x128xf32> to vector<2x128xf32>
    %c0_5 = arith.constant 0 : index
    %c0_6 = arith.constant 0 : index
    %6 = vector.load %arg9[%c0_5, %c0_6] : memref<2x32xf32, #tpu.memory_space<vmem>>, vector<2x32xf32>
    %cst = arith.constant dense<0.000000e+00> : vector<2x128xf32>
    %7 = tpu.matmul %6, %3, %cst {dimension_numbers = #tpu.dot_dimension_numbers<[1], [0], [0], [1], [0, 0, 1, 1], [], []>} : vector<2x32xf32>, vector<32x128xf32>, vector<2x128xf32> -> vector<2x128xf32>
    %8 = arith.addf %5, %7 : vector<2x128xf32>
    %9 = vector.extract_strided_slice %8 {offsets = [0, 0], sizes = [2, 32], strides = [1, 1]} : vector<2x128xf32> to vector<2x32xf32>
    %10 = arith.negf %9 : vector<2x32xf32>
    %11 = math.exp %10 : vector<2x32xf32>
    %cst_7 = arith.constant 1.000000e+00 : f32
    %12 = vector.broadcast %cst_7 : f32 to vector<2x32xf32>
    %13 = arith.addf %12, %11 : vector<2x32xf32>
    %14 = arith.divf %12, %13 : vector<2x32xf32>
    %15 = vector.extract_strided_slice %8 {offsets = [0, 32], sizes = [2, 32], strides = [1, 1]} : vector<2x128xf32> to vector<2x32xf32>
    %16 = arith.negf %15 : vector<2x32xf32>
    %17 = math.exp %16 : vector<2x32xf32>
    %cst_8 = arith.constant 1.000000e+00 : f32
    %18 = vector.broadcast %cst_8 : f32 to vector<2x32xf32>
    %19 = arith.addf %18, %17 : vector<2x32xf32>
    %20 = arith.divf %18, %19 : vector<2x32xf32>
    %21 = vector.extract_strided_slice %8 {offsets = [0, 64], sizes = [2, 32], strides = [1, 1]} : vector<2x128xf32> to vector<2x32xf32>
    %22 = math.tanh %21 : vector<2x32xf32>
    %23 = vector.extract_strided_slice %8 {offsets = [0, 96], sizes = [2, 32], strides = [1, 1]} : vector<2x128xf32> to vector<2x32xf32>
    %24 = arith.negf %23 : vector<2x32xf32>
    %25 = math.exp %24 : vector<2x32xf32>
    %cst_9 = arith.constant 1.000000e+00 : f32
    %26 = vector.broadcast %cst_9 : f32 to vector<2x32xf32>
    %27 = arith.addf %26, %25 : vector<2x32xf32>
    %28 = arith.divf %26, %27 : vector<2x32xf32>
    %c0_10 = arith.constant 0 : index
    %c0_11 = arith.constant 0 : index
    %29 = vector.load %arg8[%c0_10, %c0_11] : memref<2x32xf32, #tpu.memory_space<vmem>>, vector<2x32xf32>
    %30 = arith.mulf %29, %14 : vector<2x32xf32>
    %31 = arith.mulf %20, %22 : vector<2x32xf32>
    %32 = arith.addf %30, %31 : vector<2x32xf32>
    %33 = math.tanh %32 : vector<2x32xf32>
    %34 = arith.mulf %28, %33 : vector<2x32xf32>
    %c0_12 = arith.constant 0 : index
    %c0_13 = arith.constant 0 : index
    %35 = vector.load %arg8[%c0_12, %c0_13] : memref<2x32xf32, #tpu.memory_space<vmem>>, vector<2x32xf32>
    tpu.vector_store %arg8[%c0_12, %c0_13], %32 {strides = array<i32>} : memref<2x32xf32, #tpu.memory_space<vmem>>, vector<2x32xf32>,
    %c0_14 = arith.constant 0 : index
    %c0_15 = arith.constant 0 : index
    %36 = vector.load %arg9[%c0_14, %c0_15] : memref<2x32xf32, #tpu.memory_space<vmem>>, vector<2x32xf32>
    tpu.vector_store %arg9[%c0_14, %c0_15], %34 {strides = array<i32>} : memref<2x32xf32, #tpu.memory_space<vmem>>, vector<2x32xf32>,
    %c0_16 = arith.constant 0 : index
    %c0_17 = arith.constant 0 : index
    %c0_18 = arith.constant 0 : index
    %37 = vector.load %arg5[%c0_16, %c0_17, %c0_18] : memref<8x2x32xf32, #tpu.memory_space<vmem>>, vector<1x2x32xf32>
    %38 = vector.shape_cast %37 : vector<1x2x32xf32> to vector<2x32xf32>
    %39 = vector.shape_cast %34 : vector<2x32xf32> to vector<1x2x32xf32>
    tpu.vector_store %arg5[%c0_16, %c0_17, %c0_18], %39 {strides = array<i32>} : memref<8x2x32xf32, #tpu.memory_space<vmem>>, vector<1x2x32xf32>,
    %c1 = arith.constant 1 : index
    %c0_19 = arith.constant 0 : index
    %c0_20 = arith.constant 0 : index
    %40 = vector.load %arg1[%c1, %c0_19, %c0_20] : memref<8x2x128xf32, #tpu.memory_space<vmem>>, vector<1x2x128xf32>
    %41 = vector.shape_cast %40 : vector<1x2x128xf32> to vector<2x128xf32>
    %c0_21 = arith.constant 0 : index
    %c0_22 = arith.constant 0 : index
    %42 = vector.load %arg9[%c0_21, %c0_22] : memref<2x32xf32, #tpu.memory_space<vmem>>, vector<2x32xf32>
    %cst_23 = arith.constant dense<0.000000e+00> : vector<2x128xf32>
    %43 = tpu.matmul %42, %3, %cst_23 {dimension_numbers = #tpu.dot_dimension_numbers<[1], [0], [0], [1], [0, 0, 1, 1], [], []>} : vector<2x32xf32>, vector<32x128xf32>, vector<2x128xf32> -> vector<2x128xf32>
    %44 = arith.addf %41, %43 : vector<2x128xf32>
    %45 = vector.extract_strided_slice %44 {offsets = [0, 0], sizes = [2, 32], strides = [1, 1]} : vector<2x128xf32> to vector<2x32xf32>
    %46 = arith.negf %45 : vector<2x32xf32>
    %47 = math.exp %46 : vector<2x32xf32>
    %cst_24 = arith.constant 1.000000e+00 : f32
    %48 = vector.broadcast %cst_24 : f32 to vector<2x32xf32>
    %49 = arith.addf %48, %47 : vector<2x32xf32>
    %50 = arith.divf %48, %49 : vector<2x32xf32>
    %51 = vector.extract_strided_slice %44 {offsets = [0, 32], sizes = [2, 32], strides = [1, 1]} : vector<2x128xf32> to vector<2x32xf32>
    %52 = arith.negf %51 : vector<2x32xf32>
    %53 = math.exp %52 : vector<2x32xf32>
    %cst_25 = arith.constant 1.000000e+00 : f32
    %54 = vector.broadcast %cst_25 : f32 to vector<2x32xf32>
    %55 = arith.addf %54, %53 : vector<2x32xf32>
    %56 = arith.divf %54, %55 : vector<2x32xf32>
    %57 = vector.extract_strided_slice %44 {offsets = [0, 64], sizes = [2, 32], strides = [1, 1]} : vector<2x128xf32> to vector<2x32xf32>
    %58 = math.tanh %57 : vector<2x32xf32>
    %59 = vector.extract_strided_slice %44 {offsets = [0, 96], sizes = [2, 32], strides = [1, 1]} : vector<2x128xf32> to vector<2x32xf32>
    %60 = arith.negf %59 : vector<2x32xf32>
    %61 = math.exp %60 : vector<2x32xf32>
    %cst_26 = arith.constant 1.000000e+00 : f32
    %62 = vector.broadcast %cst_26 : f32 to vector<2x32xf32>
    %63 = arith.addf %62, %61 : vector<2x32xf32>
    %64 = arith.divf %62, %63 : vector<2x32xf32>
    %c0_27 = arith.constant 0 : index
    %c0_28 = arith.constant 0 : index
    %65 = vector.load %arg8[%c0_27, %c0_28] : memref<2x32xf32, #tpu.memory_space<vmem>>, vector<2x32xf32>
    %66 = arith.mulf %65, %50 : vector<2x32xf32>
    %67 = arith.mulf %56, %58 : vector<2x32xf32>
    %68 = arith.addf %66, %67 : vector<2x32xf32>
    %69 = math.tanh %68 : vector<2x32xf32>
    %70 = arith.mulf %64, %69 : vector<2x32xf32>
    %c0_29 = arith.constant 0 : index
    %c0_30 = arith.constant 0 : index
    %71 = vector.load %arg8[%c0_29, %c0_30] : memref<2x32xf32, #tpu.memory_space<vmem>>, vector<2x32xf32>
    tpu.vector_store %arg8[%c0_29, %c0_30], %68 {strides = array<i32>} : memref<2x32xf32, #tpu.memory_space<vmem>>, vector<2x32xf32>,
    %c0_31 = arith.constant 0 : index
    %c0_32 = arith.constant 0 : index
    %72 = vector.load %arg9[%c0_31, %c0_32] : memref<2x32xf32, #tpu.memory_space<vmem>>, vector<2x32xf32>
    tpu.vector_store %arg9[%c0_31, %c0_32], %70 {strides = array<i32>} : memref<2x32xf32, #tpu.memory_space<vmem>>, vector<2x32xf32>,
    %c1_33 = arith.constant 1 : index
    %c0_34 = arith.constant 0 : index
    %c0_35 = arith.constant 0 : index
    %73 = vector.load %arg5[%c1_33, %c0_34, %c0_35] : memref<8x2x32xf32, #tpu.memory_space<vmem>>, vector<1x2x32xf32>
    %74 = vector.shape_cast %73 : vector<1x2x32xf32> to vector<2x32xf32>
    %75 = vector.shape_cast %70 : vector<2x32xf32> to vector<1x2x32xf32>
    tpu.vector_store %arg5[%c1_33, %c0_34, %c0_35], %75 {strides = array<i32>} : memref<8x2x32xf32, #tpu.memory_space<vmem>>, vector<1x2x32xf32>,
    %c2 = arith.constant 2 : index
    %c0_36 = arith.constant 0 : index
    %c0_37 = arith.constant 0 : index
    %76 = vector.load %arg1[%c2, %c0_36, %c0_37] : memref<8x2x128xf32, #tpu.memory_space<vmem>>, vector<1x2x128xf32>
    %77 = vector.shape_cast %76 : vector<1x2x128xf32> to vector<2x128xf32>
    %c0_38 = arith.constant 0 : index
    %c0_39 = arith.constant 0 : index
    %78 = vector.load %arg9[%c0_38, %c0_39] : memref<2x32xf32, #tpu.memory_space<vmem>>, vector<2x32xf32>
    %cst_40 = arith.constant dense<0.000000e+00> : vector<2x128xf32>
    %79 = tpu.matmul %78, %3, %cst_40 {dimension_numbers = #tpu.dot_dimension_numbers<[1], [0], [0], [1], [0, 0, 1, 1], [], []>} : vector<2x32xf32>, vector<32x128xf32>, vector<2x128xf32> -> vector<2x128xf32>
    %80 = arith.addf %77, %79 : vector<2x128xf32>
    %81 = vector.extract_strided_slice %80 {offsets = [0, 0], sizes = [2, 32], strides = [1, 1]} : vector<2x128xf32> to vector<2x32xf32>
    %82 = arith.negf %81 : vector<2x32xf32>
    %83 = math.exp %82 : vector<2x32xf32>
    %cst_41 = arith.constant 1.000000e+00 : f32
    %84 = vector.broadcast %cst_41 : f32 to vector<2x32xf32>
    %85 = arith.addf %84, %83 : vector<2x32xf32>
    %86 = arith.divf %84, %85 : vector<2x32xf32>
    %87 = vector.extract_strided_slice %80 {offsets = [0, 32], sizes = [2, 32], strides = [1, 1]} : vector<2x128xf32> to vector<2x32xf32>
    %88 = arith.negf %87 : vector<2x32xf32>
    %89 = math.exp %88 : vector<2x32xf32>
    %cst_42 = arith.constant 1.000000e+00 : f32
    %90 = vector.broadcast %cst_42 : f32 to vector<2x32xf32>
    %91 = arith.addf %90, %89 : vector<2x32xf32>
    %92 = arith.divf %90, %91 : vector<2x32xf32>
    %93 = vector.extract_strided_slice %80 {offsets = [0, 64], sizes = [2, 32], strides = [1, 1]} : vector<2x128xf32> to vector<2x32xf32>
    %94 = math.tanh %93 : vector<2x32xf32>
    %95 = vector.extract_strided_slice %80 {offsets = [0, 96], sizes = [2, 32], strides = [1, 1]} : vector<2x128xf32> to vector<2x32xf32>
    %96 = arith.negf %95 : vector<2x32xf32>
    %97 = math.exp %96 : vector<2x32xf32>
    %cst_43 = arith.constant 1.000000e+00 : f32
    %98 = vector.broadcast %cst_43 : f32 to vector<2x32xf32>
    %99 = arith.addf %98, %97 : vector<2x32xf32>
    %100 = arith.divf %98, %99 : vector<2x32xf32>
    %c0_44 = arith.constant 0 : index
    %c0_45 = arith.constant 0 : index
    %101 = vector.load %arg8[%c0_44, %c0_45] : memref<2x32xf32, #tpu.memory_space<vmem>>, vector<2x32xf32>
    %102 = arith.mulf %101, %86 : vector<2x32xf32>
    %103 = arith.mulf %92, %94 : vector<2x32xf32>
    %104 = arith.addf %102, %103 : vector<2x32xf32>
    %105 = math.tanh %104 : vector<2x32xf32>
    %106 = arith.mulf %100, %105 : vector<2x32xf32>
    %c0_46 = arith.constant 0 : index
    %c0_47 = arith.constant 0 : index
    %107 = vector.load %arg8[%c0_46, %c0_47] : memref<2x32xf32, #tpu.memory_space<vmem>>, vector<2x32xf32>
    tpu.vector_store %arg8[%c0_46, %c0_47], %104 {strides = array<i32>} : memref<2x32xf32, #tpu.memory_space<vmem>>, vector<2x32xf32>,
    %c0_48 = arith.constant 0 : index
    %c0_49 = arith.constant 0 : index
    %108 = vector.load %arg9[%c0_48, %c0_49] : memref<2x32xf32, #tpu.memory_space<vmem>>, vector<2x32xf32>
    tpu.vector_store %arg9[%c0_48, %c0_49], %106 {strides = array<i32>} : memref<2x32xf32, #tpu.memory_space<vmem>>, vector<2x32xf32>,
    %c2_50 = arith.constant 2 : index
    %c0_51 = arith.constant 0 : index
    %c0_52 = arith.constant 0 : index
    %109 = vector.load %arg5[%c2_50, %c0_51, %c0_52] : memref<8x2x32xf32, #tpu.memory_space<vmem>>, vector<1x2x32xf32>
    %110 = vector.shape_cast %109 : vector<1x2x32xf32> to vector<2x32xf32>
    %111 = vector.shape_cast %106 : vector<2x32xf32> to vector<1x2x32xf32>
    tpu.vector_store %arg5[%c2_50, %c0_51, %c0_52], %111 {strides = array<i32>} : memref<8x2x32xf32, #tpu.memory_space<vmem>>, vector<1x2x32xf32>,
    %c3 = arith.constant 3 : index
    %c0_53 = arith.constant 0 : index
    %c0_54 = arith.constant 0 : index
    %112 = vector.load %arg1[%c3, %c0_53, %c0_54] : memref<8x2x128xf32, #tpu.memory_space<vmem>>, vector<1x2x128xf32>
    %113 = vector.shape_cast %112 : vector<1x2x128xf32> to vector<2x128xf32>
    %c0_55 = arith.constant 0 : index
    %c0_56 = arith.constant 0 : index
    %114 = vector.load %arg9[%c0_55, %c0_56] : memref<2x32xf32, #tpu.memory_space<vmem>>, vector<2x32xf32>
    %cst_57 = arith.constant dense<0.000000e+00> : vector<2x128xf32>
    %115 = tpu.matmul %114, %3, %cst_57 {dimension_numbers = #tpu.dot_dimension_numbers<[1], [0], [0], [1], [0, 0, 1, 1], [], []>} : vector<2x32xf32>, vector<32x128xf32>, vector<2x128xf32> -> vector<2x128xf32>
    %116 = arith.addf %113, %115 : vector<2x128xf32>
    %117 = vector.extract_strided_slice %116 {offsets = [0, 0], sizes = [2, 32], strides = [1, 1]} : vector<2x128xf32> to vector<2x32xf32>
    %118 = arith.negf %117 : vector<2x32xf32>
    %119 = math.exp %118 : vector<2x32xf32>
    %cst_58 = arith.constant 1.000000e+00 : f32
    %120 = vector.broadcast %cst_58 : f32 to vector<2x32xf32>
    %121 = arith.addf %120, %119 : vector<2x32xf32>
    %122 = arith.divf %120, %121 : vector<2x32xf32>
    %123 = vector.extract_strided_slice %116 {offsets = [0, 32], sizes = [2, 32], strides = [1, 1]} : vector<2x128xf32> to vector<2x32xf32>
    %124 = arith.negf %123 : vector<2x32xf32>
    %125 = math.exp %124 : vector<2x32xf32>
    %cst_59 = arith.constant 1.000000e+00 : f32
    %126 = vector.broadcast %cst_59 : f32 to vector<2x32xf32>
    %127 = arith.addf %126, %125 : vector<2x32xf32>
    %128 = arith.divf %126, %127 : vector<2x32xf32>
    %129 = vector.extract_strided_slice %116 {offsets = [0, 64], sizes = [2, 32], strides = [1, 1]} : vector<2x128xf32> to vector<2x32xf32>
    %130 = math.tanh %129 : vector<2x32xf32>
    %131 = vector.extract_strided_slice %116 {offsets = [0, 96], sizes = [2, 32], strides = [1, 1]} : vector<2x128xf32> to vector<2x32xf32>
    %132 = arith.negf %131 : vector<2x32xf32>
    %133 = math.exp %132 : vector<2x32xf32>
    %cst_60 = arith.constant 1.000000e+00 : f32
    %134 = vector.broadcast %cst_60 : f32 to vector<2x32xf32>
    %135 = arith.addf %134, %133 : vector<2x32xf32>
    %136 = arith.divf %134, %135 : vector<2x32xf32>
    %c0_61 = arith.constant 0 : index
    %c0_62 = arith.constant 0 : index
    %137 = vector.load %arg8[%c0_61, %c0_62] : memref<2x32xf32, #tpu.memory_space<vmem>>, vector<2x32xf32>
    %138 = arith.mulf %137, %122 : vector<2x32xf32>
    %139 = arith.mulf %128, %130 : vector<2x32xf32>
    %140 = arith.addf %138, %139 : vector<2x32xf32>
    %141 = math.tanh %140 : vector<2x32xf32>
    %142 = arith.mulf %136, %141 : vector<2x32xf32>
    %c0_63 = arith.constant 0 : index
    %c0_64 = arith.constant 0 : index
    %143 = vector.load %arg8[%c0_63, %c0_64] : memref<2x32xf32, #tpu.memory_space<vmem>>, vector<2x32xf32>
    tpu.vector_store %arg8[%c0_63, %c0_64], %140 {strides = array<i32>} : memref<2x32xf32, #tpu.memory_space<vmem>>, vector<2x32xf32>,
    %c0_65 = arith.constant 0 : index
    %c0_66 = arith.constant 0 : index
    %144 = vector.load %arg9[%c0_65, %c0_66] : memref<2x32xf32, #tpu.memory_space<vmem>>, vector<2x32xf32>
    tpu.vector_store %arg9[%c0_65, %c0_66], %142 {strides = array<i32>} : memref<2x32xf32, #tpu.memory_space<vmem>>, vector<2x32xf32>,
    %c3_67 = arith.constant 3 : index
    %c0_68 = arith.constant 0 : index
    %c0_69 = arith.constant 0 : index
    %145 = vector.load %arg5[%c3_67, %c0_68, %c0_69] : memref<8x2x32xf32, #tpu.memory_space<vmem>>, vector<1x2x32xf32>
    %146 = vector.shape_cast %145 : vector<1x2x32xf32> to vector<2x32xf32>
    %147 = vector.shape_cast %142 : vector<2x32xf32> to vector<1x2x32xf32>
    tpu.vector_store %arg5[%c3_67, %c0_68, %c0_69], %147 {strides = array<i32>} : memref<8x2x32xf32, #tpu.memory_space<vmem>>, vector<1x2x32xf32>,
    %c4 = arith.constant 4 : index
    %c0_70 = arith.constant 0 : index
    %c0_71 = arith.constant 0 : index
    %148 = vector.load %arg1[%c4, %c0_70, %c0_71] : memref<8x2x128xf32, #tpu.memory_space<vmem>>, vector<1x2x128xf32>
    %149 = vector.shape_cast %148 : vector<1x2x128xf32> to vector<2x128xf32>
    %c0_72 = arith.constant 0 : index
    %c0_73 = arith.constant 0 : index
    %150 = vector.load %arg9[%c0_72, %c0_73] : memref<2x32xf32, #tpu.memory_space<vmem>>, vector<2x32xf32>
    %cst_74 = arith.constant dense<0.000000e+00> : vector<2x128xf32>
    %151 = tpu.matmul %150, %3, %cst_74 {dimension_numbers = #tpu.dot_dimension_numbers<[1], [0], [0], [1], [0, 0, 1, 1], [], []>} : vector<2x32xf32>, vector<32x128xf32>, vector<2x128xf32> -> vector<2x128xf32>
    %152 = arith.addf %149, %151 : vector<2x128xf32>
    %153 = vector.extract_strided_slice %152 {offsets = [0, 0], sizes = [2, 32], strides = [1, 1]} : vector<2x128xf32> to vector<2x32xf32>
    %154 = arith.negf %153 : vector<2x32xf32>
    %155 = math.exp %154 : vector<2x32xf32>
    %cst_75 = arith.constant 1.000000e+00 : f32
    %156 = vector.broadcast %cst_75 : f32 to vector<2x32xf32>
    %157 = arith.addf %156, %155 : vector<2x32xf32>
    %158 = arith.divf %156, %157 : vector<2x32xf32>
    %159 = vector.extract_strided_slice %152 {offsets = [0, 32], sizes = [2, 32], strides = [1, 1]} : vector<2x128xf32> to vector<2x32xf32>
    %160 = arith.negf %159 : vector<2x32xf32>
    %161 = math.exp %160 : vector<2x32xf32>
    %cst_76 = arith.constant 1.000000e+00 : f32
    %162 = vector.broadcast %cst_76 : f32 to vector<2x32xf32>
    %163 = arith.addf %162, %161 : vector<2x32xf32>
    %164 = arith.divf %162, %163 : vector<2x32xf32>
    %165 = vector.extract_strided_slice %152 {offsets = [0, 64], sizes = [2, 32], strides = [1, 1]} : vector<2x128xf32> to vector<2x32xf32>
    %166 = math.tanh %165 : vector<2x32xf32>
    %167 = vector.extract_strided_slice %152 {offsets = [0, 96], sizes = [2, 32], strides = [1, 1]} : vector<2x128xf32> to vector<2x32xf32>
    %168 = arith.negf %167 : vector<2x32xf32>
    %169 = math.exp %168 : vector<2x32xf32>
    %cst_77 = arith.constant 1.000000e+00 : f32
    %170 = vector.broadcast %cst_77 : f32 to vector<2x32xf32>
    %171 = arith.addf %170, %169 : vector<2x32xf32>
    %172 = arith.divf %170, %171 : vector<2x32xf32>
    %c0_78 = arith.constant 0 : index
    %c0_79 = arith.constant 0 : index
    %173 = vector.load %arg8[%c0_78, %c0_79] : memref<2x32xf32, #tpu.memory_space<vmem>>, vector<2x32xf32>
    %174 = arith.mulf %173, %158 : vector<2x32xf32>
    %175 = arith.mulf %164, %166 : vector<2x32xf32>
    %176 = arith.addf %174, %175 : vector<2x32xf32>
    %177 = math.tanh %176 : vector<2x32xf32>
    %178 = arith.mulf %172, %177 : vector<2x32xf32>
    %c0_80 = arith.constant 0 : index
    %c0_81 = arith.constant 0 : index
    %179 = vector.load %arg8[%c0_80, %c0_81] : memref<2x32xf32, #tpu.memory_space<vmem>>, vector<2x32xf32>
    tpu.vector_store %arg8[%c0_80, %c0_81], %176 {strides = array<i32>} : memref<2x32xf32, #tpu.memory_space<vmem>>, vector<2x32xf32>,
    %c0_82 = arith.constant 0 : index
    %c0_83 = arith.constant 0 : index
    %180 = vector.load %arg9[%c0_82, %c0_83] : memref<2x32xf32, #tpu.memory_space<vmem>>, vector<2x32xf32>
    tpu.vector_store %arg9[%c0_82, %c0_83], %178 {strides = array<i32>} : memref<2x32xf32, #tpu.memory_space<vmem>>, vector<2x32xf32>,
    %c4_84 = arith.constant 4 : index
    %c0_85 = arith.constant 0 : index
    %c0_86 = arith.constant 0 : index
    %181 = vector.load %arg5[%c4_84, %c0_85, %c0_86] : memref<8x2x32xf32, #tpu.memory_space<vmem>>, vector<1x2x32xf32>
    %182 = vector.shape_cast %181 : vector<1x2x32xf32> to vector<2x32xf32>
    %183 = vector.shape_cast %178 : vector<2x32xf32> to vector<1x2x32xf32>
    tpu.vector_store %arg5[%c4_84, %c0_85, %c0_86], %183 {strides = array<i32>} : memref<8x2x32xf32, #tpu.memory_space<vmem>>, vector<1x2x32xf32>,
    %c5 = arith.constant 5 : index
    %c0_87 = arith.constant 0 : index
    %c0_88 = arith.constant 0 : index
    %184 = vector.load %arg1[%c5, %c0_87, %c0_88] : memref<8x2x128xf32, #tpu.memory_space<vmem>>, vector<1x2x128xf32>
    %185 = vector.shape_cast %184 : vector<1x2x128xf32> to vector<2x128xf32>
    %c0_89 = arith.constant 0 : index
    %c0_90 = arith.constant 0 : index
    %186 = vector.load %arg9[%c0_89, %c0_90] : memref<2x32xf32, #tpu.memory_space<vmem>>, vector<2x32xf32>
    %cst_91 = arith.constant dense<0.000000e+00> : vector<2x128xf32>
    %187 = tpu.matmul %186, %3, %cst_91 {dimension_numbers = #tpu.dot_dimension_numbers<[1], [0], [0], [1], [0, 0, 1, 1], [], []>} : vector<2x32xf32>, vector<32x128xf32>, vector<2x128xf32> -> vector<2x128xf32>
    %188 = arith.addf %185, %187 : vector<2x128xf32>
    %189 = vector.extract_strided_slice %188 {offsets = [0, 0], sizes = [2, 32], strides = [1, 1]} : vector<2x128xf32> to vector<2x32xf32>
    %190 = arith.negf %189 : vector<2x32xf32>
    %191 = math.exp %190 : vector<2x32xf32>
    %cst_92 = arith.constant 1.000000e+00 : f32
    %192 = vector.broadcast %cst_92 : f32 to vector<2x32xf32>
    %193 = arith.addf %192, %191 : vector<2x32xf32>
    %194 = arith.divf %192, %193 : vector<2x32xf32>
    %195 = vector.extract_strided_slice %188 {offsets = [0, 32], sizes = [2, 32], strides = [1, 1]} : vector<2x128xf32> to vector<2x32xf32>
    %196 = arith.negf %195 : vector<2x32xf32>
    %197 = math.exp %196 : vector<2x32xf32>
    %cst_93 = arith.constant 1.000000e+00 : f32
    %198 = vector.broadcast %cst_93 : f32 to vector<2x32xf32>
    %199 = arith.addf %198, %197 : vector<2x32xf32>
    %200 = arith.divf %198, %199 : vector<2x32xf32>
    %201 = vector.extract_strided_slice %188 {offsets = [0, 64], sizes = [2, 32], strides = [1, 1]} : vector<2x128xf32> to vector<2x32xf32>
    %202 = math.tanh %201 : vector<2x32xf32>
    %203 = vector.extract_strided_slice %188 {offsets = [0, 96], sizes = [2, 32], strides = [1, 1]} : vector<2x128xf32> to vector<2x32xf32>
    %204 = arith.negf %203 : vector<2x32xf32>
    %205 = math.exp %204 : vector<2x32xf32>
    %cst_94 = arith.constant 1.000000e+00 : f32
    %206 = vector.broadcast %cst_94 : f32 to vector<2x32xf32>
    %207 = arith.addf %206, %205 : vector<2x32xf32>
    %208 = arith.divf %206, %207 : vector<2x32xf32>
    %c0_95 = arith.constant 0 : index
    %c0_96 = arith.constant 0 : index
    %209 = vector.load %arg8[%c0_95, %c0_96] : memref<2x32xf32, #tpu.memory_space<vmem>>, vector<2x32xf32>
    %210 = arith.mulf %209, %194 : vector<2x32xf32>
    %211 = arith.mulf %200, %202 : vector<2x32xf32>
    %212 = arith.addf %210, %211 : vector<2x32xf32>
    %213 = math.tanh %212 : vector<2x32xf32>
    %214 = arith.mulf %208, %213 : vector<2x32xf32>
    %c0_97 = arith.constant 0 : index
    %c0_98 = arith.constant 0 : index
    %215 = vector.load %arg8[%c0_97, %c0_98] : memref<2x32xf32, #tpu.memory_space<vmem>>, vector<2x32xf32>
    tpu.vector_store %arg8[%c0_97, %c0_98], %212 {strides = array<i32>} : memref<2x32xf32, #tpu.memory_space<vmem>>, vector<2x32xf32>,
    %c0_99 = arith.constant 0 : index
    %c0_100 = arith.constant 0 : index
    %216 = vector.load %arg9[%c0_99, %c0_100] : memref<2x32xf32, #tpu.memory_space<vmem>>, vector<2x32xf32>
    tpu.vector_store %arg9[%c0_99, %c0_100], %214 {strides = array<i32>} : memref<2x32xf32, #tpu.memory_space<vmem>>, vector<2x32xf32>,
    %c5_101 = arith.constant 5 : index
    %c0_102 = arith.constant 0 : index
    %c0_103 = arith.constant 0 : index
    %217 = vector.load %arg5[%c5_101, %c0_102, %c0_103] : memref<8x2x32xf32, #tpu.memory_space<vmem>>, vector<1x2x32xf32>
    %218 = vector.shape_cast %217 : vector<1x2x32xf32> to vector<2x32xf32>
    %219 = vector.shape_cast %214 : vector<2x32xf32> to vector<1x2x32xf32>
    tpu.vector_store %arg5[%c5_101, %c0_102, %c0_103], %219 {strides = array<i32>} : memref<8x2x32xf32, #tpu.memory_space<vmem>>, vector<1x2x32xf32>,
    %c6 = arith.constant 6 : index
    %c0_104 = arith.constant 0 : index
    %c0_105 = arith.constant 0 : index
    %220 = vector.load %arg1[%c6, %c0_104, %c0_105] : memref<8x2x128xf32, #tpu.memory_space<vmem>>, vector<1x2x128xf32>
    %221 = vector.shape_cast %220 : vector<1x2x128xf32> to vector<2x128xf32>
    %c0_106 = arith.constant 0 : index
    %c0_107 = arith.constant 0 : index
    %222 = vector.load %arg9[%c0_106, %c0_107] : memref<2x32xf32, #tpu.memory_space<vmem>>, vector<2x32xf32>
    %cst_108 = arith.constant dense<0.000000e+00> : vector<2x128xf32>
    %223 = tpu.matmul %222, %3, %cst_108 {dimension_numbers = #tpu.dot_dimension_numbers<[1], [0], [0], [1], [0, 0, 1, 1], [], []>} : vector<2x32xf32>, vector<32x128xf32>, vector<2x128xf32> -> vector<2x128xf32>
    %224 = arith.addf %221, %223 : vector<2x128xf32>
    %225 = vector.extract_strided_slice %224 {offsets = [0, 0], sizes = [2, 32], strides = [1, 1]} : vector<2x128xf32> to vector<2x32xf32>
    %226 = arith.negf %225 : vector<2x32xf32>
    %227 = math.exp %226 : vector<2x32xf32>
    %cst_109 = arith.constant 1.000000e+00 : f32
    %228 = vector.broadcast %cst_109 : f32 to vector<2x32xf32>
    %229 = arith.addf %228, %227 : vector<2x32xf32>
    %230 = arith.divf %228, %229 : vector<2x32xf32>
    %231 = vector.extract_strided_slice %224 {offsets = [0, 32], sizes = [2, 32], strides = [1, 1]} : vector<2x128xf32> to vector<2x32xf32>
    %232 = arith.negf %231 : vector<2x32xf32>
    %233 = math.exp %232 : vector<2x32xf32>
    %cst_110 = arith.constant 1.000000e+00 : f32
    %234 = vector.broadcast %cst_110 : f32 to vector<2x32xf32>
    %235 = arith.addf %234, %233 : vector<2x32xf32>
    %236 = arith.divf %234, %235 : vector<2x32xf32>
    %237 = vector.extract_strided_slice %224 {offsets = [0, 64], sizes = [2, 32], strides = [1, 1]} : vector<2x128xf32> to vector<2x32xf32>
    %238 = math.tanh %237 : vector<2x32xf32>
    %239 = vector.extract_strided_slice %224 {offsets = [0, 96], sizes = [2, 32], strides = [1, 1]} : vector<2x128xf32> to vector<2x32xf32>
    %240 = arith.negf %239 : vector<2x32xf32>
    %241 = math.exp %240 : vector<2x32xf32>
    %cst_111 = arith.constant 1.000000e+00 : f32
    %242 = vector.broadcast %cst_111 : f32 to vector<2x32xf32>
    %243 = arith.addf %242, %241 : vector<2x32xf32>
    %244 = arith.divf %242, %243 : vector<2x32xf32>
    %c0_112 = arith.constant 0 : index
    %c0_113 = arith.constant 0 : index
    %245 = vector.load %arg8[%c0_112, %c0_113] : memref<2x32xf32, #tpu.memory_space<vmem>>, vector<2x32xf32>
    %246 = arith.mulf %245, %230 : vector<2x32xf32>
    %247 = arith.mulf %236, %238 : vector<2x32xf32>
    %248 = arith.addf %246, %247 : vector<2x32xf32>
    %249 = math.tanh %248 : vector<2x32xf32>
    %250 = arith.mulf %244, %249 : vector<2x32xf32>
    %c0_114 = arith.constant 0 : index
    %c0_115 = arith.constant 0 : index
    %251 = vector.load %arg8[%c0_114, %c0_115] : memref<2x32xf32, #tpu.memory_space<vmem>>, vector<2x32xf32>
    tpu.vector_store %arg8[%c0_114, %c0_115], %248 {strides = array<i32>} : memref<2x32xf32, #tpu.memory_space<vmem>>, vector<2x32xf32>,
    %c0_116 = arith.constant 0 : index
    %c0_117 = arith.constant 0 : index
    %252 = vector.load %arg9[%c0_116, %c0_117] : memref<2x32xf32, #tpu.memory_space<vmem>>, vector<2x32xf32>
    tpu.vector_store %arg9[%c0_116, %c0_117], %250 {strides = array<i32>} : memref<2x32xf32, #tpu.memory_space<vmem>>, vector<2x32xf32>,
    %c6_118 = arith.constant 6 : index
    %c0_119 = arith.constant 0 : index
    %c0_120 = arith.constant 0 : index
    %253 = vector.load %arg5[%c6_118, %c0_119, %c0_120] : memref<8x2x32xf32, #tpu.memory_space<vmem>>, vector<1x2x32xf32>
    %254 = vector.shape_cast %253 : vector<1x2x32xf32> to vector<2x32xf32>
    %255 = vector.shape_cast %250 : vector<2x32xf32> to vector<1x2x32xf32>
    tpu.vector_store %arg5[%c6_118, %c0_119, %c0_120], %255 {strides = array<i32>} : memref<8x2x32xf32, #tpu.memory_space<vmem>>, vector<1x2x32xf32>,
    %c7 = arith.constant 7 : index
    %c0_121 = arith.constant 0 : index
    %c0_122 = arith.constant 0 : index
    %256 = vector.load %arg1[%c7, %c0_121, %c0_122] : memref<8x2x128xf32, #tpu.memory_space<vmem>>, vector<1x2x128xf32>
    %257 = vector.shape_cast %256 : vector<1x2x128xf32> to vector<2x128xf32>
    %c0_123 = arith.constant 0 : index
    %c0_124 = arith.constant 0 : index
    %258 = vector.load %arg9[%c0_123, %c0_124] : memref<2x32xf32, #tpu.memory_space<vmem>>, vector<2x32xf32>
    %cst_125 = arith.constant dense<0.000000e+00> : vector<2x128xf32>
    %259 = tpu.matmul %258, %3, %cst_125 {dimension_numbers = #tpu.dot_dimension_numbers<[1], [0], [0], [1], [0, 0, 1, 1], [], []>} : vector<2x32xf32>, vector<32x128xf32>, vector<2x128xf32> -> vector<2x128xf32>
    %260 = arith.addf %257, %259 : vector<2x128xf32>
    %261 = vector.extract_strided_slice %260 {offsets = [0, 0], sizes = [2, 32], strides = [1, 1]} : vector<2x128xf32> to vector<2x32xf32>
    %262 = arith.negf %261 : vector<2x32xf32>
    %263 = math.exp %262 : vector<2x32xf32>
    %cst_126 = arith.constant 1.000000e+00 : f32
    %264 = vector.broadcast %cst_126 : f32 to vector<2x32xf32>
    %265 = arith.addf %264, %263 : vector<2x32xf32>
    %266 = arith.divf %264, %265 : vector<2x32xf32>
    %267 = vector.extract_strided_slice %260 {offsets = [0, 32], sizes = [2, 32], strides = [1, 1]} : vector<2x128xf32> to vector<2x32xf32>
    %268 = arith.negf %267 : vector<2x32xf32>
    %269 = math.exp %268 : vector<2x32xf32>
    %cst_127 = arith.constant 1.000000e+00 : f32
    %270 = vector.broadcast %cst_127 : f32 to vector<2x32xf32>
    %271 = arith.addf %270, %269 : vector<2x32xf32>
    %272 = arith.divf %270, %271 : vector<2x32xf32>
    %273 = vector.extract_strided_slice %260 {offsets = [0, 64], sizes = [2, 32], strides = [1, 1]} : vector<2x128xf32> to vector<2x32xf32>
    %274 = math.tanh %273 : vector<2x32xf32>
    %275 = vector.extract_strided_slice %260 {offsets = [0, 96], sizes = [2, 32], strides = [1, 1]} : vector<2x128xf32> to vector<2x32xf32>
    %276 = arith.negf %275 : vector<2x32xf32>
    %277 = math.exp %276 : vector<2x32xf32>
    %cst_128 = arith.constant 1.000000e+00 : f32
    %278 = vector.broadcast %cst_128 : f32 to vector<2x32xf32>
    %279 = arith.addf %278, %277 : vector<2x32xf32>
    %280 = arith.divf %278, %279 : vector<2x32xf32>
    %c0_129 = arith.constant 0 : index
    %c0_130 = arith.constant 0 : index
    %281 = vector.load %arg8[%c0_129, %c0_130] : memref<2x32xf32, #tpu.memory_space<vmem>>, vector<2x32xf32>
    %282 = arith.mulf %281, %266 : vector<2x32xf32>
    %283 = arith.mulf %272, %274 : vector<2x32xf32>
    %284 = arith.addf %282, %283 : vector<2x32xf32>
    %285 = math.tanh %284 : vector<2x32xf32>
    %286 = arith.mulf %280, %285 : vector<2x32xf32>
    %c0_131 = arith.constant 0 : index
    %c0_132 = arith.constant 0 : index
    %287 = vector.load %arg8[%c0_131, %c0_132] : memref<2x32xf32, #tpu.memory_space<vmem>>, vector<2x32xf32>
    tpu.vector_store %arg8[%c0_131, %c0_132], %284 {strides = array<i32>} : memref<2x32xf32, #tpu.memory_space<vmem>>, vector<2x32xf32>,
    %c0_133 = arith.constant 0 : index
    %c0_134 = arith.constant 0 : index
    %288 = vector.load %arg9[%c0_133, %c0_134] : memref<2x32xf32, #tpu.memory_space<vmem>>, vector<2x32xf32>
    tpu.vector_store %arg9[%c0_133, %c0_134], %286 {strides = array<i32>} : memref<2x32xf32, #tpu.memory_space<vmem>>, vector<2x32xf32>,
    %c7_135 = arith.constant 7 : index
    %c0_136 = arith.constant 0 : index
    %c0_137 = arith.constant 0 : index
    %289 = vector.load %arg5[%c7_135, %c0_136, %c0_137] : memref<8x2x32xf32, #tpu.memory_space<vmem>>, vector<1x2x32xf32>
    %290 = vector.shape_cast %289 : vector<1x2x32xf32> to vector<2x32xf32>
    %291 = vector.shape_cast %286 : vector<2x32xf32> to vector<1x2x32xf32>
    tpu.vector_store %arg5[%c7_135, %c0_136, %c0_137], %291 {strides = array<i32>} : memref<8x2x32xf32, #tpu.memory_space<vmem>>, vector<1x2x32xf32>,
    %c0_i32_138 = arith.constant 0 : i32
    %292 = arith.cmpi eq, %arg0, %c0_i32_138 : i32
    %293 = arith.extui %292 : i1 to i32
    %c0_i32_139 = arith.constant 0 : i32
    %294 = arith.cmpi ne, %293, %c0_i32_139 : i32
    scf.if %294 {
      %c0_140 = arith.constant 0 : index
      %c0_141 = arith.constant 0 : index
      %295 = vector.load %arg8[%c0_140, %c0_141] : memref<2x32xf32, #tpu.memory_space<vmem>>, vector<2x32xf32>
      %c0_142 = arith.constant 0 : index
      %c0_143 = arith.constant 0 : index
      %296 = vector.load %arg6[%c0_142, %c0_143] : memref<2x32xf32, #tpu.memory_space<vmem>>, vector<2x32xf32>
      tpu.vector_store %arg6[%c0_142, %c0_143], %295 {strides = array<i32>} : memref<2x32xf32, #tpu.memory_space<vmem>>, vector<2x32xf32>,
      %c0_144 = arith.constant 0 : index
      %c0_145 = arith.constant 0 : index
      %297 = vector.load %arg9[%c0_144, %c0_145] : memref<2x32xf32, #tpu.memory_space<vmem>>, vector<2x32xf32>
      %c0_146 = arith.constant 0 : index
      %c0_147 = arith.constant 0 : index
      %298 = vector.load %arg7[%c0_146, %c0_147] : memref<2x32xf32, #tpu.memory_space<vmem>>, vector<2x32xf32>
      tpu.vector_store %arg7[%c0_146, %c0_147], %297 {strides = array<i32>} : memref<2x32xf32, #tpu.memory_space<vmem>>, vector<2x32xf32>,
    } else {
    }
    return
  }
  func.func @transform_0(%arg0: i32) -> (i32, i32, i32) {
    %c0_i32 = arith.constant 0 : i32
    %c0_i32_0 = arith.constant 0 : i32
    %c0_i32_1 = arith.constant 0 : i32
    return %arg0, %c0_i32, %c0_i32_0 : i32, i32, i32
  }
  func.func @transform_1(%arg0: i32) -> (i32, i32) {
    %c0_i32 = arith.constant 0 : i32
    %c0_i32_0 = arith.constant 0 : i32
    %c0_i32_1 = arith.constant 0 : i32
    return %c0_i32, %c0_i32_0 : i32, i32
  }
  func.func @transform_2(%arg0: i32) -> (i32, i32) {
    %c0_i32 = arith.constant 0 : i32
    %c0_i32_0 = arith.constant 0 : i32
    %c0_i32_1 = arith.constant 0 : i32
    return %c0_i32, %c0_i32_0 : i32, i32
  }
  func.func @transform_3(%arg0: i32) -> (i32, i32) {
    %c0_i32 = arith.constant 0 : i32
    %c0_i32_0 = arith.constant 0 : i32
    %c0_i32_1 = arith.constant 0 : i32
    return %c0_i32, %c0_i32_0 : i32, i32
  }
  func.func @transform_4(%arg0: i32) -> (i32, i32, i32) {
    %c0_i32 = arith.constant 0 : i32
    %c0_i32_0 = arith.constant 0 : i32
    %c0_i32_1 = arith.constant 0 : i32
    return %arg0, %c0_i32, %c0_i32_0 : i32, i32, i32
  }
  func.func @transform_5(%arg0: i32) -> (i32, i32) {
    %c0_i32 = arith.constant 0 : i32
    %c0_i32_0 = arith.constant 0 : i32
    %c0_i32_1 = arith.constant 0 : i32
    return %c0_i32, %c0_i32_0 : i32, i32
  }
  func.func @transform_6(%arg0: i32) -> (i32, i32) {
    %c0_i32 = arith.constant 0 : i32
    %c0_i32_0 = arith.constant 0 : i32
    %c0_i32_1 = arith.constant 0 : i32
    return %c0_i32, %c0_i32_0 : i32, i32
  }
}

</mosaic_0001>

<llo_original>
// kernel: ptblm_forward.5
$region0: #{ptblm_forward.5}
  #allocation0 [shape = 'u32[]', space=smem, size = 0x4, offset = 0x4, fixed_abs, tag = 'smem constant byte address 0x4 - core index']
  #allocation1 [shape = 'u32[144,128]{1,0:T(1,128)}', space=vmem, size = 0x12000, scoped, tag = 'internal scratch']
  #allocation2 [shape = 'f32[16,128]{1,0:T(8,128)}', space=vmem, size = 0x2000, scoped, tag = 'scratch operand']
  %s0 = inlined_call_operand.vmem [shape: f32[16,32], index: 0, kind: input, shape index: {}]
  %s1 = inlined_call_operand.vmem [shape: f32[32,128], index: 1, kind: input, shape index: {}]
  %s2 = inlined_call_operand.vmem [shape: f32[1,128], index: 2, kind: input, shape index: {}]
  %s3 = inlined_call_operand.vmem [shape: f32[16,128], index: 3, kind: output, shape index: {}]
  %s4 = sld [smem:[#allocation0]]
  $region30: #{ptblm_forward.5} parent=0
    _
  %s6 = ssub.s32 1, %s4
  %s7 = scalar_select 0, %s6, %s4
  // Predicated region
  $region2: #{ptblm_forward.5} parent=0 // pred_check
    _
  $region3: #{ptblm_forward.5} parent=0 // pred_check_branch
    %9 = sbr.rel (0) target = $region5
  $region4: #{ptblm_forward.5} parent=0 // pred_region
    _
  $region5: #{ptblm_forward.5} parent=0 // pred_fallthru
    _
  // Predicated region
  $region6: #{ptblm_forward.5} parent=0 // pred_check
    _
  $region7: #{ptblm_forward.5} parent=0 // pred_check_branch
    %11 = sbr.rel (0) target = $region9
  $region8: #{ptblm_forward.5} parent=0 // pred_region
    _
  $region9: #{ptblm_forward.5} parent=0 // pred_fallthru
    _
  // Predicated region
  $region10: #{ptblm_forward.5} parent=0 // pred_check
    _
  $region11: #{ptblm_forward.5} parent=0 // pred_check_branch
    %13 = sbr.rel (0) target = $region13
  $region12: #{ptblm_forward.5} parent=0 // pred_region
    _
  $region13: #{ptblm_forward.5} parent=0 // pred_fallthru
    _
  %p14 = scmp.eq.s32.totalorder 0, 0
  // Predicated region
  $region14: #{ptblm_forward.5} parent=0 // pred_check
    %p15 = pneg %p14
  $region15: #{ptblm_forward.5} parent=0 // pred_check_branch
    %17 = sbr.rel (%p15) target = $region17
  $region16: #{ptblm_forward.5} parent=0 // pred_region
    %18 = vst [vmem:[#allocation2] sm:$0xff] 0.0
    %19 = vst [vmem:[#allocation2 + $0x8] sm:$0xff] 0.0
  $region17: #{ptblm_forward.5} parent=0 // pred_fallthru
    _
  %v20 = vld [vmem:[#allocation2] sm:$0xff]
  %v21 = vld [vmem:[#allocation2 + $0x8] sm:$0xff]
  %v22 = vld [vmem:[%s0] sm:$0xff]
  %v23 = vld [vmem:[%s0 + $0x8] sm:$0xff]
  %v24 = vld [vmem:[%s1] sm:$0xff]
  %v25 = vld [vmem:[%s1 + $0x8] sm:$0xff]
  %v26 = vld [vmem:[%s1 + $0x10] sm:$0xff]
  %v27 = vld [vmem:[%s1 + $0x18] sm:$0xff]
  %vm28 = vcmask 261120
  %v30 = vsel %vm28, %v22, 0
  %v33 = vsel %vm28, %v23, 0
  %35 = vmatprep.subr.mxu0 0.0
  %36 = vmatpush1.msra.mxu0 %v24
  %37 = vmatprep.subr.mxu0 0.0
  %38 = vmatpush1.msra.mxu0 %v25
  %39 = vmatprep.subr.mxu0 0.0
  %40 = vmatpush1.msra.mxu0 %v26
  %41 = vmatprep.subr.mxu0 0.0
  %42 = vmatpush1.msra.mxu0 %v27
  %43 = vmatprep.subr.mxu0 0.0
  %44 = vmatpush1.msra.mxu0 0.0
  %45 = vmatprep.subr.mxu0 0.0
  %46 = vmatpush1.msra.mxu0 0.0
  %47 = vmatprep.subr.mxu0 0.0
  %48 = vmatpush1.msra.mxu0 0.0
  %49 = vmatprep.subr.mxu0 0.0
  %50 = vmatpush1.msra.mxu0 0.0
  %51 = vmatprep.subr.mxu0 0.0
  %52 = vmatpush1.msra.mxu0 0.0
  %53 = vmatprep.subr.mxu0 0.0
  %54 = vmatpush1.msra.mxu0 0.0
  %55 = vmatprep.subr.mxu0 0.0
  %56 = vmatpush1.msra.mxu0 0.0
  %57 = vmatprep.subr.mxu0 0.0
  %58 = vmatpush1.msra.mxu0 0.0
  %59 = vmatprep.subr.mxu0 0.0
  %60 = vmatpush1.msra.mxu0 0.0
  %61 = vmatprep.subr.mxu0 0.0
  %62 = vmatpush1.msra.mxu0 0.0
  %63 = vmatprep.subr.mxu0 0.0
  %64 = vmatpush1.msra.mxu0 0.0
  %65 = vmatprep.subr.mxu0 0.0
  %66 = vmatpush1.msra.mxu0 0.0
  %67 = vmatprep.subr.mxu0 0.0
  %68 = vmatpush1.msra.mxu0 0.0
  %69 = vmatprep.subr.mxu0 0.0
  %70 = vmatpush1.msra.mxu0 0.0
  %71 = vmatprep.subr.mxu0 0.0
  %72 = vmatpush1.msra.mxu0 0.0
  %73 = vmatprep.subr.mxu0 0.0
  %74 = vmatpush1.msra.mxu0 0.0
  %75 = vmatprep.subr.mxu0 0.0
  %76 = vmatpush1.msra.mxu0 0.0
  %77 = vmatprep.subr.mxu0 0.0
  %78 = vmatpush1.msra.mxu0 0.0
  %79 = vmatprep.subr.mxu0 0.0
  %80 = vmatpush1.msra.mxu0 0.0
  %81 = vmatprep.subr.mxu0 0.0
  %82 = vmatpush1.msra.mxu0 0.0
  %83 = vmatprep.subr.mxu0 0.0
  %84 = vmatpush1.msra.mxu0 0.0
  %85 = vmatprep.subr.mxu0 0.0
  %86 = vmatpush1.msra.mxu0 0.0
  %87 = vmatprep.subr.mxu0 0.0
  %88 = vmatpush1.msra.mxu0 0.0
  %89 = vmatprep.subr.mxu0 0.0
  %90 = vmatpush1.msra.mxu0 0.0
  %91 = vmatprep.subr.mxu0 0.0
  %92 = vmatpush1.msra.mxu0 0.0
  %93 = vmatprep.subr.mxu0 0.0
  %94 = vmatpush1.msra.mxu0 0.0
  %95 = vmatprep.subr.mxu0 0.0
  %96 = vmatpush1.msra.mxu0 0.0
  %97 = vmatprep.subr.mxu0 0.0
  %98 = vmatpush1.msra.mxu0 0.0
  %99 = vmatprep.mubr.f32.mxu0 0.0
  %100 = vmatmul.mubr.f32.gmra.mrb[0].mxu0 %v30
  %v101 = vpop.f32.mrb[0].mxu0
  %v102 = vadd.f32 0.0, %v101
  %v103 = vpop.f32.mrb[0].mxu0
  %104 = vmatprep.mubr.f32.mxu0 0.0
  %105 = vmatmul.mubr.f32.gmra.mrb[0].mxu0 %v33
  %v106 = vpop.f32.mrb[0].mxu0
  %v107 = vadd.f32 0.0, %v106
  %v108 = vpop.f32.mrb[0].mxu0
  %109 = vdwg.mxu0
  %v110 = vadd.f32 %v20, %v102
  %v111 = vadd.f32 %v21, %v107
  %112 = vst [vmem:[#allocation2] sm:$0xff] %v110
  %113 = vst [vmem:[#allocation2 + $0x8] sm:$0xff] %v111
  // Predicated region
  $region18: #{ptblm_forward.5} parent=0 // pred_check
    %p114 = pneg %p14
  $region19: #{ptblm_forward.5} parent=0 // pred_check_branch
    %116 = sbr.rel (%p114) target = $region21
  $region20: #{ptblm_forward.5} parent=0 // pred_region
    %v117 = vld [vmem:[#allocation2] sm:$0xff]
    %v118 = vld [vmem:[#allocation2 + $0x8] sm:$0xff]
    %v119 = vld [vmem:[%s2] sm:$0x1]
    %v121 = vlaneseq
    %v122 = vshrl.u32 %v121, 7
    %v123 = vsub.s32 0, %v122
    %v124 = vrot.slane %v119, %v123
    %v126 = vadd.f32 %v117, %v124
    %v127 = vadd.f32 %v118, %v124
    %128 = vst [vmem:[%s3] sm:$0xff] %v126
    %129 = vst [vmem:[%s3 + $0x8] sm:$0xff] %v127
  $region21: #{ptblm_forward.5} parent=0 // pred_fallthru
    _
  // Predicated region
  $region22: #{ptblm_forward.5} parent=0 // pred_check
    _
  $region23: #{ptblm_forward.5} parent=0 // pred_check_branch
    %131 = sbr.rel (0) target = $region25
  $region24: #{ptblm_forward.5} parent=0 // pred_region
    _
  $region25: #{ptblm_forward.5} parent=0 // pred_fallthru
    _
  // Predicated region
  $region26: #{ptblm_forward.5} parent=0 // pred_check
    _
  $region27: #{ptblm_forward.5} parent=0 // pred_check_branch
    %133 = sbr.rel (0) target = $region29
  $region28: #{ptblm_forward.5} parent=0 // pred_region
    _
  $region29: #{ptblm_forward.5} parent=0 // pred_fallthru
    _

// kernel: ptblm_forward.9
$region0: #{ptblm_forward.9}
  #allocation0 [shape = 'u32[]', space=smem, size = 0x4, offset = 0x4, fixed_abs, tag = 'smem constant byte address 0x4 - core index']
  #allocation1 [shape = 'u32[144,128]{1,0:T(1,128)}', space=vmem, size = 0x12000, scoped, tag = 'internal scratch']
  #allocation2 [shape = 'f32[16,64]{1,0:T(8,128)}', space=vmem, size = 0x2000, scoped, tag = 'scratch operand']
  %s0 = inlined_call_operand.vmem [shape: f32[16,32], index: 0, kind: input, shape index: {}]
  %s1 = inlined_call_operand.vmem [shape: f32[32,64], index: 1, kind: input, shape index: {}]
  %s2 = inlined_call_operand.vmem [shape: f32[1,64], index: 2, kind: input, shape index: {}]
  %s3 = inlined_call_operand.vmem [shape: f32[16,64], index: 3, kind: output, shape index: {}]
  %s4 = sld [smem:[#allocation0]]
  $region30: #{ptblm_forward.9} parent=0
    _
  %s6 = ssub.s32 1, %s4
  %s7 = scalar_select 0, %s6, %s4
  // Predicated region
  $region2: #{ptblm_forward.9} parent=0 // pred_check
    _
  $region3: #{ptblm_forward.9} parent=0 // pred_check_branch
    %9 = sbr.rel (0) target = $region5
  $region4: #{ptblm_forward.9} parent=0 // pred_region
    _
  $region5: #{ptblm_forward.9} parent=0 // pred_fallthru
    _
  // Predicated region
  $region6: #{ptblm_forward.9} parent=0 // pred_check
    _
  $region7: #{ptblm_forward.9} parent=0 // pred_check_branch
    %11 = sbr.rel (0) target = $region9
  $region8: #{ptblm_forward.9} parent=0 // pred_region
    _
  $region9: #{ptblm_forward.9} parent=0 // pred_fallthru
    _
  // Predicated region
  $region10: #{ptblm_forward.9} parent=0 // pred_check
    _
  $region11: #{ptblm_forward.9} parent=0 // pred_check_branch
    %13 = sbr.rel (0) target = $region13
  $region12: #{ptblm_forward.9} parent=0 // pred_region
    _
  $region13: #{ptblm_forward.9} parent=0 // pred_fallthru
    _
  %p14 = scmp.eq.s32.totalorder 0, 0
  // Predicated region
  $region14: #{ptblm_forward.9} parent=0 // pred_check
    %p15 = pneg %p14
  $region15: #{ptblm_forward.9} parent=0 // pred_check_branch
    %17 = sbr.rel (%p15) target = $region17
  $region16: #{ptblm_forward.9} parent=0 // pred_region
    %vm18 = vcmask 523264
    %19 = vst.msk [vmem:[#allocation2] sm:$0xff] %vm18, 0.0
    %20 = vst.msk [vmem:[#allocation2 + $0x8] sm:$0xff] %vm18, 0.0
  $region17: #{ptblm_forward.9} parent=0 // pred_fallthru
    _
  %v21 = vld [vmem:[#allocation2] sm:$0xff]
  %v22 = vld [vmem:[#allocation2 + $0x8] sm:$0xff]
  %v23 = vld [vmem:[%s0] sm:$0xff]
  %v24 = vld [vmem:[%s0 + $0x8] sm:$0xff]
  %v25 = vld [vmem:[%s1] sm:$0xff]
  %v26 = vld [vmem:[%s1 + $0x8] sm:$0xff]
  %v27 = vld [vmem:[%s1 + $0x10] sm:$0xff]
  %v28 = vld [vmem:[%s1 + $0x18] sm:$0xff]
  %vm29 = vcmask 261120
  %v31 = vsel %vm29, %v23, 0
  %v34 = vsel %vm29, %v24, 0
  %36 = vmatprep.subr.mxu0 0.0
  %37 = vmatpush1.msra.mxu0 %v25
  %38 = vmatprep.subr.mxu0 0.0
  %39 = vmatpush1.msra.mxu0 %v26
  %40 = vmatprep.subr.mxu0 0.0
  %41 = vmatpush1.msra.mxu0 %v27
  %42 = vmatprep.subr.mxu0 0.0
  %43 = vmatpush1.msra.mxu0 %v28
  %44 = vmatprep.subr.mxu0 0.0
  %45 = vmatpush1.msra.mxu0 0.0
  %46 = vmatprep.subr.mxu0 0.0
  %47 = vmatpush1.msra.mxu0 0.0
  %48 = vmatprep.subr.mxu0 0.0
  %49 = vmatpush1.msra.mxu0 0.0
  %50 = vmatprep.subr.mxu0 0.0
  %51 = vmatpush1.msra.mxu0 0.0
  %52 = vmatprep.subr.mxu0 0.0
  %53 = vmatpush1.msra.mxu0 0.0
  %54 = vmatprep.subr.mxu0 0.0
  %55 = vmatpush1.msra.mxu0 0.0
  %56 = vmatprep.subr.mxu0 0.0
  %57 = vmatpush1.msra.mxu0 0.0
  %58 = vmatprep.subr.mxu0 0.0
  %59 = vmatpush1.msra.mxu0 0.0
  %60 = vmatprep.subr.mxu0 0.0
  %61 = vmatpush1.msra.mxu0 0.0
  %62 = vmatprep.subr.mxu0 0.0
  %63 = vmatpush1.msra.mxu0 0.0
  %64 = vmatprep.subr.mxu0 0.0
  %65 = vmatpush1.msra.mxu0 0.0
  %66 = vmatprep.subr.mxu0 0.0
  %67 = vmatpush1.msra.mxu0 0.0
  %68 = vmatprep.subr.mxu0 0.0
  %69 = vmatpush1.msra.mxu0 0.0
  %70 = vmatprep.subr.mxu0 0.0
  %71 = vmatpush1.msra.mxu0 0.0
  %72 = vmatprep.subr.mxu0 0.0
  %73 = vmatpush1.msra.mxu0 0.0
  %74 = vmatprep.subr.mxu0 0.0
  %75 = vmatpush1.msra.mxu0 0.0
  %76 = vmatprep.subr.mxu0 0.0
  %77 = vmatpush1.msra.mxu0 0.0
  %78 = vmatprep.subr.mxu0 0.0
  %79 = vmatpush1.msra.mxu0 0.0
  %80 = vmatprep.subr.mxu0 0.0
  %81 = vmatpush1.msra.mxu0 0.0
  %82 = vmatprep.subr.mxu0 0.0
  %83 = vmatpush1.msra.mxu0 0.0
  %84 = vmatprep.subr.mxu0 0.0
  %85 = vmatpush1.msra.mxu0 0.0
  %86 = vmatprep.subr.mxu0 0.0
  %87 = vmatpush1.msra.mxu0 0.0
  %88 = vmatprep.subr.mxu0 0.0
  %89 = vmatpush1.msra.mxu0 0.0
  %90 = vmatprep.subr.mxu0 0.0
  %91 = vmatpush1.msra.mxu0 0.0
  %92 = vmatprep.subr.mxu0 0.0
  %93 = vmatpush1.msra.mxu0 0.0
  %94 = vmatprep.subr.mxu0 0.0
  %95 = vmatpush1.msra.mxu0 0.0
  %96 = vmatprep.subr.mxu0 0.0
  %97 = vmatpush1.msra.mxu0 0.0
  %98 = vmatprep.subr.mxu0 0.0
  %99 = vmatpush1.msra.mxu0 0.0
  %100 = vmatprep.mubr.f32.mxu0 0.0
  %101 = vmatmul.mubr.f32.gmra.mrb[0].mxu0 %v31
  %v102 = vpop.f32.mrb[0].mxu0
  %v103 = vadd.f32 0.0, %v102
  %v104 = vpop.f32.mrb[0].mxu0
  %105 = vmatprep.mubr.f32.mxu0 0.0
  %106 = vmatmul.mubr.f32.gmra.mrb[0].mxu0 %v34
  %v107 = vpop.f32.mrb[0].mxu0
  %v108 = vadd.f32 0.0, %v107
  %v109 = vpop.f32.mrb[0].mxu0
  %110 = vdwg.mxu0
  %v111 = vadd.f32 %v21, %v103
  %v112 = vadd.f32 %v22, %v108
  %vm113 = vcmask 523264
  %114 = vst.msk [vmem:[#allocation2] sm:$0xff] %vm113, %v111
  %115 = vst.msk [vmem:[#allocation2 + $0x8] sm:$0xff] %vm113, %v112
  // Predicated region
  $region18: #{ptblm_forward.9} parent=0 // pred_check
    %p116 = pneg %p14
  $region19: #{ptblm_forward.9} parent=0 // pred_check_branch
    %118 = sbr.rel (%p116) target = $region21
  $region20: #{ptblm_forward.9} parent=0 // pred_region
    %v119 = vld [vmem:[#allocation2] sm:$0xff]
    %v120 = vld [vmem:[#allocation2 + $0x8] sm:$0xff]
    %v121 = vld [vmem:[%s2] sm:$0x1]
    %v123 = vlaneseq
    %v124 = vshrl.u32 %v123, 7
    %v125 = vsub.s32 0, %v124
    %v126 = vrot.slane %v121, %v125
    %v128 = vadd.f32 %v119, %v126
    %v129 = vadd.f32 %v120, %v126
    %130 = vst.msk [vmem:[%s3] sm:$0xff] %vm113, %v128
    %131 = vst.msk [vmem:[%s3 + $0x8] sm:$0xff] %vm113, %v129
  $region21: #{ptblm_forward.9} parent=0 // pred_fallthru
    _
  // Predicated region
  $region22: #{ptblm_forward.9} parent=0 // pred_check
    _
  $region23: #{ptblm_forward.9} parent=0 // pred_check_branch
    %133 = sbr.rel (0) target = $region25
  $region24: #{ptblm_forward.9} parent=0 // pred_region
    _
  $region25: #{ptblm_forward.9} parent=0 // pred_fallthru
    _
  // Predicated region
  $region26: #{ptblm_forward.9} parent=0 // pred_check
    _
  $region27: #{ptblm_forward.9} parent=0 // pred_check_branch
    %135 = sbr.rel (0) target = $region29
  $region28: #{ptblm_forward.9} parent=0 // pred_region
    _
  $region29: #{ptblm_forward.9} parent=0 // pred_fallthru
    _

// kernel: ptblm_forward.6
$region0: #{ptblm_forward.6}
  #allocation0 [shape = 'u32[]', space=smem, size = 0x4, offset = 0x4, fixed_abs, tag = 'smem constant byte address 0x4 - core index']
  #allocation1 [shape = 'u32[144,128]{1,0:T(1,128)}', space=vmem, size = 0x12000, scoped, tag = 'internal scratch']
  #allocation2 [shape = 'f32[2,32]{1,0:T(2,128)}', space=vmem, size = 0x400, scoped, tag = 'scratch operand']
  #allocation3 [shape = 'f32[2,32]{1,0:T(2,128)}', space=vmem, size = 0x400, scoped, tag = 'scratch operand']
  %s0 = inlined_call_operand.vmem [shape: f32[8,2,128], index: 0, kind: input, shape index: {}]
  %s1 = inlined_call_operand.vmem [shape: f32[32,128], index: 1, kind: input, shape index: {}]
  %s2 = inlined_call_operand.vmem [shape: f32[2,32], index: 2, kind: input, shape index: {}]
  %s3 = inlined_call_operand.vmem [shape: f32[2,32], index: 3, kind: input, shape index: {}]
  %s4 = inlined_call_operand.vmem [shape: f32[8,2,32], index: 4, kind: output, shape index: {0}]
  %s5 = inlined_call_operand.hbm [shape: f32[2,32], index: 5, kind: output, shape index: {1}]
  %s6 = inlined_call_operand.hbm [shape: f32[2,32], index: 6, kind: output, shape index: {2}]
  %7 = xla_tuple %s4, %s5, %s6
  %s8 = sld [smem:[#allocation0]]
  $region50: #{ptblm_forward.6} parent=0
    _
  %s10 = ssub.s32 1, %s8
  %s11 = scalar_select 0, %s10, %s8
  $region1: #{ptblm_forward.6} parent=0
    #allocation4 [shape = 'u8[1024]{0}', space=vmem, size = 0x400, scoped, tag = 'output window, operand 1, single buffered']
    #allocation5 [shape = 's32[1]{0}', space=sflag, size = 0x4, scoped, tag = 'scoped memory for ptblm_forward.6']
    #allocation6 [shape = 'u8[1024]{0}', space=vmem, size = 0x400, scoped, tag = 'output window, operand 2, single buffered']
    #allocation7 [shape = 's32[1]{0}', space=sflag, size = 0x4, scoped, tag = 'scoped memory for ptblm_forward.6']
    %12 = vsyncpa [#allocation5], 0
    %13 = vsyncpa [#allocation7], 0
    // Predicated region
    $region2: #{ptblm_forward.6} parent=1 // pred_check
      _
    $region3: #{ptblm_forward.6} parent=1 // pred_check_branch
      %15 = sbr.rel (0) target = $region5
    $region4: #{ptblm_forward.6} parent=1 // pred_region
      _
    $region5: #{ptblm_forward.6} parent=1 // pred_fallthru
      _
    // Predicated region
    $region6: #{ptblm_forward.6} parent=1 // pred_check
      _
    $region7: #{ptblm_forward.6} parent=1 // pred_check_branch
      %17 = sbr.rel (0) target = $region9
    $region8: #{ptblm_forward.6} parent=1 // pred_region
      _
    $region9: #{ptblm_forward.6} parent=1 // pred_fallthru
      _
    // Predicated region
    $region10: #{ptblm_forward.6} parent=1 // pred_check
      _
    $region11: #{ptblm_forward.6} parent=1 // pred_check_branch
      %19 = sbr.rel (0) target = $region13
    $region12: #{ptblm_forward.6} parent=1 // pred_region
      _
    $region13: #{ptblm_forward.6} parent=1 // pred_fallthru
      _
    // Predicated region
    $region14: #{ptblm_forward.6} parent=1 // pred_check
      _
    $region15: #{ptblm_forward.6} parent=1 // pred_check_branch
      %21 = sbr.rel (0) target = $region17
    $region16: #{ptblm_forward.6} parent=1 // pred_region
      _
    $region17: #{ptblm_forward.6} parent=1 // pred_fallthru
      _
    %p22 = scmp.eq.s32.totalorder 0, 0
    // Predicated region
    $region18: #{ptblm_forward.6} parent=1 // pred_check
      %p23 = pneg %p22
    $region19: #{ptblm_forward.6} parent=1 // pred_check_branch
      %25 = sbr.rel (%p23) target = $region21
    $region20: #{ptblm_forward.6} parent=1 // pred_region
      %v26 = vld [vmem:[%s2] sm:$0x3]
      %vm27 = vcmask 254976
      %28 = vst.msk [vmem:[#allocation2] sm:$0x3] %vm27, %v26
      %v29 = vld [vmem:[%s3] sm:$0x3]
      %30 = vst.msk [vmem:[#allocation3] sm:$0x3] %vm27, %v29
    $region21: #{ptblm_forward.6} parent=1 // pred_fallthru
      _
    %v31 = vld [vmem:[%s1] sm:$0xff]
    %v32 = vld [vmem:[%s1 + $0x8] sm:$0xff]
    %v33 = vld [vmem:[%s1 + $0x10] sm:$0xff]
    %v34 = vld [vmem:[%s1 + $0x18] sm:$0xff]
    %v35 = vld [vmem:[%s0] sm:$0x3]
    %v36 = vld [vmem:[#allocation3] sm:$0x3]
    %vm37 = vcmask 261120
    %v39 = vsel %vm37, %v36, 0
    %41 = vmatprep.subr.mxu0 0.0
    %42 = vmatpush1.msra.mxu0 %v31
    %43 = vmatprep.subr.mxu0 0.0
    %44 = vmatpush1.msra.mxu0 %v32
    %45 = vmatprep.subr.mxu0 0.0
    %46 = vmatpush1.msra.mxu0 %v33
    %47 = vmatprep.subr.mxu0 0.0
    %48 = vmatpush1.msra.mxu0 %v34
    %49 = vmatprep.subr.mxu0 0.0
    %50 = vmatpush1.msra.mxu0 0.0
    %51 = vmatprep.subr.mxu0 0.0
    %52 = vmatpush1.msra.mxu0 0.0
    %53 = vmatprep.subr.mxu0 0.0
    %54 = vmatpush1.msra.mxu0 0.0
    %55 = vmatprep.subr.mxu0 0.0
    %56 = vmatpush1.msra.mxu0 0.0
    %57 = vmatprep.subr.mxu0 0.0
    %58 = vmatpush1.msra.mxu0 0.0
    %59 = vmatprep.subr.mxu0 0.0
    %60 = vmatpush1.msra.mxu0 0.0
    %61 = vmatprep.subr.mxu0 0.0
    %62 = vmatpush1.msra.mxu0 0.0
    %63 = vmatprep.subr.mxu0 0.0
    %64 = vmatpush1.msra.mxu0 0.0
    %65 = vmatprep.subr.mxu0 0.0
    %66 = vmatpush1.msra.mxu0 0.0
    %67 = vmatprep.subr.mxu0 0.0
    %68 = vmatpush1.msra.mxu0 0.0
    %69 = vmatprep.subr.mxu0 0.0
    %70 = vmatpush1.msra.mxu0 0.0
    %71 = vmatprep.subr.mxu0 0.0
    %72 = vmatpush1.msra.mxu0 0.0
    %73 = vmatprep.subr.mxu0 0.0
    %74 = vmatpush1.msra.mxu0 0.0
    %75 = vmatprep.subr.mxu0 0.0
    %76 = vmatpush1.msra.mxu0 0.0
    %77 = vmatprep.subr.mxu0 0.0
    %78 = vmatpush1.msra.mxu0 0.0
    %79 = vmatprep.subr.mxu0 0.0
    %80 = vmatpush1.msra.mxu0 0.0
    %81 = vmatprep.subr.mxu0 0.0
    %82 = vmatpush1.msra.mxu0 0.0
    %83 = vmatprep.subr.mxu0 0.0
    %84 = vmatpush1.msra.mxu0 0.0
    %85 = vmatprep.subr.mxu0 0.0
    %86 = vmatpush1.msra.mxu0 0.0
    %87 = vmatprep.subr.mxu0 0.0
    %88 = vmatpush1.msra.mxu0 0.0
    %89 = vmatprep.subr.mxu0 0.0
    %90 = vmatpush1.msra.mxu0 0.0
    %91 = vmatprep.subr.mxu0 0.0
    %92 = vmatpush1.msra.mxu0 0.0
    %93 = vmatprep.subr.mxu0 0.0
    %94 = vmatpush1.msra.mxu0 0.0
    %95 = vmatprep.subr.mxu0 0.0
    %96 = vmatpush1.msra.mxu0 0.0
    %97 = vmatprep.subr.mxu0 0.0
    %98 = vmatpush1.msra.mxu0 0.0
    %99 = vmatprep.subr.mxu0 0.0
    %100 = vmatpush1.msra.mxu0 0.0
    %101 = vmatprep.subr.mxu0 0.0
    %102 = vmatpush1.msra.mxu0 0.0
    %103 = vmatprep.subr.mxu0 0.0
    %104 = vmatpush1.msra.mxu0 0.0
    %105 = vmatprep.mubr.f32.mxu0 0.0
    %106 = vmatmul.mubr.f32.gmra.mrb[0].mxu0 %v39
    %v107 = vpop.f32.mrb[0].mxu0
    %v108 = vadd.f32 0.0, %v107
    %v109 = vpop.f32.mrb[0].mxu0
    %110 = vdwg.mxu0
    %v111 = vadd.f32 %v35, %v108
    %v112 = vxor.u32 %v111, 2147483648
    %v113 = vmul.f32 %v112, 1.442695
    %v114 = vpow.pop %v113
    %v115 = vadd.f32 %v114, 1.0
    %v116 = vrcp.pop %v115
    %v117 = vmul.f32 1.0, %v116
    %v118 = vtanh.pop %v111
    %v119 = vld [vmem:[#allocation2] sm:$0x3]
    %v120 = vmul.f32 %v119, %v117
    %122 = vrot.lane.b32.xlu0 %v118, 96
    %v123 = vpop.permute.xlu0 %122
    %v125 = vmul.f32 %v117, %v123
    %127 = vrot.lane.b32.xlu0 %v125, 96
    %v128 = vpop.permute.xlu0 %127
    %v130 = vadd.f32 %v120, %v128
    %v131 = vtanh.pop %v130
    %133 = vrot.lane.b32.xlu0 %v131, 96
    %v134 = vpop.permute.xlu0 %133
    %v136 = vmul.f32 %v117, %v134
    %vm137 = vcmask 254976
    %138 = vst.msk [vmem:[#allocation2] sm:$0x3] %vm137, %v130
    %140 = vrot.lane.b32.xlu0 %v136, 32
    %v141 = vpop.permute.xlu0 %140
    %143 = vst.msk [vmem:[#allocation3] sm:$0x3] %vm137, %v141
    %144 = vst.msk [vmem:[%s4] sm:$0x3] %vm137, %v141
    %s145 = scalar_lea.vmem %s0, 2
    %v146 = vld [vmem:[%s145] sm:$0x3]
    %v147 = vld [vmem:[#allocation3] sm:$0x3]
    %v149 = vsel %vm37, %v147, 0
    %151 = vmatprep.subr.mxu0 0.0
    %152 = vmatpush1.msra.mxu0 %v31
    %153 = vmatprep.subr.mxu0 0.0
    %154 = vmatpush1.msra.mxu0 %v32
    %155 = vmatprep.subr.mxu0 0.0
    %156 = vmatpush1.msra.mxu0 %v33
    %157 = vmatprep.subr.mxu0 0.0
    %158 = vmatpush1.msra.mxu0 %v34
    %159 = vmatprep.subr.mxu0 0.0
    %160 = vmatpush1.msra.mxu0 0.0
    %161 = vmatprep.subr.mxu0 0.0
    %162 = vmatpush1.msra.mxu0 0.0
    %163 = vmatprep.subr.mxu0 0.0
    %164 = vmatpush1.msra.mxu0 0.0
    %165 = vmatprep.subr.mxu0 0.0
    %166 = vmatpush1.msra.mxu0 0.0
    %167 = vmatprep.subr.mxu0 0.0
    %168 = vmatpush1.msra.mxu0 0.0
    %169 = vmatprep.subr.mxu0 0.0
    %170 = vmatpush1.msra.mxu0 0.0
    %171 = vmatprep.subr.mxu0 0.0
    %172 = vmatpush1.msra.mxu0 0.0
    %173 = vmatprep.subr.mxu0 0.0
    %174 = vmatpush1.msra.mxu0 0.0
    %175 = vmatprep.subr.mxu0 0.0
    %176 = vmatpush1.msra.mxu0 0.0
    %177 = vmatprep.subr.mxu0 0.0
    %178 = vmatpush1.msra.mxu0 0.0
    %179 = vmatprep.subr.mxu0 0.0
    %180 = vmatpush1.msra.mxu0 0.0
    %181 = vmatprep.subr.mxu0 0.0
    %182 = vmatpush1.msra.mxu0 0.0
    %183 = vmatprep.subr.mxu0 0.0
    %184 = vmatpush1.msra.mxu0 0.0
    %185 = vmatprep.subr.mxu0 0.0
    %186 = vmatpush1.msra.mxu0 0.0
    %187 = vmatprep.subr.mxu0 0.0
    %188 = vmatpush1.msra.mxu0 0.0
    %189 = vmatprep.subr.mxu0 0.0
    %190 = vmatpush1.msra.mxu0 0.0
    %191 = vmatprep.subr.mxu0 0.0
    %192 = vmatpush1.msra.mxu0 0.0
    %193 = vmatprep.subr.mxu0 0.0
    %194 = vmatpush1.msra.mxu0 0.0
    %195 = vmatprep.subr.mxu0 0.0
    %196 = vmatpush1.msra.mxu0 0.0
    %197 = vmatprep.subr.mxu0 0.0
    %198 = vmatpush1.msra.mxu0 0.0
    %199 = vmatprep.subr.mxu0 0.0
    %200 = vmatpush1.msra.mxu0 0.0
    %201 = vmatprep.subr.mxu0 0.0
    %202 = vmatpush1.msra.mxu0 0.0
    %203 = vmatprep.subr.mxu0 0.0
    %204 = vmatpush1.msra.mxu0 0.0
    %205 = vmatprep.subr.mxu0 0.0
    %206 = vmatpush1.msra.mxu0 0.0
    %207 = vmatprep.subr.mxu0 0.0
    %208 = vmatpush1.msra.mxu0 0.0
    %209 = vmatprep.subr.mxu0 0.0
    %210 = vmatpush1.msra.mxu0 0.0
    %211 = vmatprep.subr.mxu0 0.0
    %212 = vmatpush1.msra.mxu0 0.0
    %213 = vmatprep.subr.mxu0 0.0
    %214 = vmatpush1.msra.mxu0 0.0
    %215 = vmatprep.mubr.f32.mxu0 0.0
    %216 = vmatmul.mubr.f32.gmra.mrb[0].mxu0 %v149
    %v217 = vpop.f32.mrb[0].mxu0
    %v218 = vadd.f32 0.0, %v217
    %v219 = vpop.f32.mrb[0].mxu0
    %220 = vdwg.mxu0
    %v221 = vadd.f32 %v146, %v218
    %v222 = vxor.u32 %v221, 2147483648
    %v223 = vmul.f32 %v222, 1.442695
    %v224 = vpow.pop %v223
    %v225 = vadd.f32 %v224, 1.0
    %v226 = vrcp.pop %v225
    %v227 = vmul.f32 1.0, %v226
    %v228 = vtanh.pop %v221
    %v229 = vld [vmem:[#allocation2] sm:$0x3]
    %v230 = vmul.f32 %v229, %v227
    %232 = vrot.lane.b32.xlu0 %v228, 96
    %v233 = vpop.permute.xlu0 %232
    %v235 = vmul.f32 %v227, %v233
    %237 = vrot.lane.b32.xlu0 %v235, 96
    %v238 = vpop.permute.xlu0 %237
    %v240 = vadd.f32 %v230, %v238
    %v241 = vtanh.pop %v240
    %243 = vrot.lane.b32.xlu0 %v241, 96
    %v244 = vpop.permute.xlu0 %243
    %v246 = vmul.f32 %v227, %v244
    %247 = vst.msk [vmem:[#allocation2] sm:$0x3] %vm137, %v240
    %249 = vrot.lane.b32.xlu0 %v246, 32
    %v250 = vpop.permute.xlu0 %249
    %252 = vst.msk [vmem:[#allocation3] sm:$0x3] %vm137, %v250
    %s253 = scalar_lea.vmem %s4, 2
    %254 = vst.msk [vmem:[%s253] sm:$0x3] %vm137, %v250
    %s255 = scalar_lea.vmem %s0, 4
    %v256 = vld [vmem:[%s255] sm:$0x3]
    %v257 = vld [vmem:[#allocation3] sm:$0x3]
    %v259 = vsel %vm37, %v257, 0
    %261 = vmatprep.subr.mxu0 0.0
    %262 = vmatpush1.msra.mxu0 %v31
    %263 = vmatprep.subr.mxu0 0.0
    %264 = vmatpush1.msra.mxu0 %v32
    %265 = vmatprep.subr.mxu0 0.0
    %266 = vmatpush1.msra.mxu0 %v33
    %267 = vmatprep.subr.mxu0 0.0
    %268 = vmatpush1.msra.mxu0 %v34
    %269 = vmatprep.subr.mxu0 0.0
    %270 = vmatpush1.msra.mxu0 0.0
    %271 = vmatprep.subr.mxu0 0.0
    %272 = vmatpush1.msra.mxu0 0.0
    %273 = vmatprep.subr.mxu0 0.0
    %274 = vmatpush1.msra.mxu0 0.0
    %275 = vmatprep.subr.mxu0 0.0
    %276 = vmatpush1.msra.mxu0 0.0
    %277 = vmatprep.subr.mxu0 0.0
    %278 = vmatpush1.msra.mxu0 0.0
    %279 = vmatprep.subr.mxu0 0.0
    %280 = vmatpush1.msra.mxu0 0.0
    %281 = vmatprep.subr.mxu0 0.0
    %282 = vmatpush1.msra.mxu0 0.0
    %283 = vmatprep.subr.mxu0 0.0
    %284 = vmatpush1.msra.mxu0 0.0
    %285 = vmatprep.subr.mxu0 0.0
    %286 = vmatpush1.msra.mxu0 0.0
    %287 = vmatprep.subr.mxu0 0.0
    %288 = vmatpush1.msra.mxu0 0.0
    %289 = vmatprep.subr.mxu0 0.0
    %290 = vmatpush1.msra.mxu0 0.0
    %291 = vmatprep.subr.mxu0 0.0
    %292 = vmatpush1.msra.mxu0 0.0
    %293 = vmatprep.subr.mxu0 0.0
    %294 = vmatpush1.msra.mxu0 0.0
    %295 = vmatprep.subr.mxu0 0.0
    %296 = vmatpush1.msra.mxu0 0.0
    %297 = vmatprep.subr.mxu0 0.0
    %298 = vmatpush1.msra.mxu0 0.0
    %299 = vmatprep.subr.mxu0 0.0
    %300 = vmatpush1.msra.mxu0 0.0
    %301 = vmatprep.subr.mxu0 0.0
    %302 = vmatpush1.msra.mxu0 0.0
    %303 = vmatprep.subr.mxu0 0.0
    %304 = vmatpush1.msra.mxu0 0.0
    %305 = vmatprep.subr.mxu0 0.0
    %306 = vmatpush1.msra.mxu0 0.0
    %307 = vmatprep.subr.mxu0 0.0
    %308 = vmatpush1.msra.mxu0 0.0
    %309 = vmatprep.subr.mxu0 0.0
    %310 = vmatpush1.msra.mxu0 0.0
    %311 = vmatprep.subr.mxu0 0.0
    %312 = vmatpush1.msra.mxu0 0.0
    %313 = vmatprep.subr.mxu0 0.0
    %314 = vmatpush1.msra.mxu0 0.0
    %315 = vmatprep.subr.mxu0 0.0
    %316 = vmatpush1.msra.mxu0 0.0
    %317 = vmatprep.subr.mxu0 0.0
    %318 = vmatpush1.msra.mxu0 0.0
    %319 = vmatprep.subr.mxu0 0.0
    %320 = vmatpush1.msra.mxu0 0.0
    %321 = vmatprep.subr.mxu0 0.0
    %322 = vmatpush1.msra.mxu0 0.0
    %323 = vmatprep.subr.mxu0 0.0
    %324 = vmatpush1.msra.mxu0 0.0
    %325 = vmatprep.mubr.f32.mxu0 0.0
    %326 = vmatmul.mubr.f32.gmra.mrb[0].mxu0 %v259
    %v327 = vpop.f32.mrb[0].mxu0
    %v328 = vadd.f32 0.0, %v327
    %v329 = vpop.f32.mrb[0].mxu0
    %330 = vdwg.mxu0
    %v331 = vadd.f32 %v256, %v328
    %v332 = vxor.u32 %v331, 2147483648
    %v333 = vmul.f32 %v332, 1.442695
    %v334 = vpow.pop %v333
    %v335 = vadd.f32 %v334, 1.0
    %v336 = vrcp.pop %v335
    %v337 = vmul.f32 1.0, %v336
    %v338 = vtanh.pop %v331
    %v339 = vld [vmem:[#allocation2] sm:$0x3]
    %v340 = vmul.f32 %v339, %v337
    %342 = vrot.lane.b32.xlu0 %v338, 96
    %v343 = vpop.permute.xlu0 %342
    %v345 = vmul.f32 %v337, %v343
    %347 = vrot.lane.b32.xlu0 %v345, 96
    %v348 = vpop.permute.xlu0 %347
    %v350 = vadd.f32 %v340, %v348
    %v351 = vtanh.pop %v350
    %353 = vrot.lane.b32.xlu0 %v351, 96
    %v354 = vpop.permute.xlu0 %353
    %v356 = vmul.f32 %v337, %v354
    %357 = vst.msk [vmem:[#allocation2] sm:$0x3] %vm137, %v350
    %359 = vrot.lane.b32.xlu0 %v356, 32
    %v360 = vpop.permute.xlu0 %359
    %362 = vst.msk [vmem:[#allocation3] sm:$0x3] %vm137, %v360
    %s363 = scalar_lea.vmem %s4, 4
    %364 = vst.msk [vmem:[%s363] sm:$0x3] %vm137, %v360
    %s365 = scalar_lea.vmem %s0, 6
    %v366 = vld [vmem:[%s365] sm:$0x3]
    %v367 = vld [vmem:[#allocation3] sm:$0x3]
    %v369 = vsel %vm37, %v367, 0
    %371 = vmatprep.subr.mxu0 0.0
    %372 = vmatpush1.msra.mxu0 %v31
    %373 = vmatprep.subr.mxu0 0.0
    %374 = vmatpush1.msra.mxu0 %v32
    %375 = vmatprep.subr.mxu0 0.0
    %376 = vmatpush1.msra.mxu0 %v33
    %377 = vmatprep.subr.mxu0 0.0
    %378 = vmatpush1.msra.mxu0 %v34
    %379 = vmatprep.subr.mxu0 0.0
    %380 = vmatpush1.msra.mxu0 0.0
    %381 = vmatprep.subr.mxu0 0.0
    %382 = vmatpush1.msra.mxu0 0.0
    %383 = vmatprep.subr.mxu0 0.0
    %384 = vmatpush1.msra.mxu0 0.0
    %385 = vmatprep.subr.mxu0 0.0
    %386 = vmatpush1.msra.mxu0 0.0
    %387 = vmatprep.subr.mxu0 0.0
    %388 = vmatpush1.msra.mxu0 0.0
    %389 = vmatprep.subr.mxu0 0.0
    %390 = vmatpush1.msra.mxu0 0.0
    %391 = vmatprep.subr.mxu0 0.0
    %392 = vmatpush1.msra.mxu0 0.0
    %393 = vmatprep.subr.mxu0 0.0
    %394 = vmatpush1.msra.mxu0 0.0
    %395 = vmatprep.subr.mxu0 0.0
    %396 = vmatpush1.msra.mxu0 0.0
    %397 = vmatprep.subr.mxu0 0.0
    %398 = vmatpush1.msra.mxu0 0.0
    %399 = vmatprep.subr.mxu0 0.0
    %400 = vmatpush1.msra.mxu0 0.0
    %401 = vmatprep.subr.mxu0 0.0
    %402 = vmatpush1.msra.mxu0 0.0
    %403 = vmatprep.subr.mxu0 0.0
    %404 = vmatpush1.msra.mxu0 0.0
    %405 = vmatprep.subr.mxu0 0.0
    %406 = vmatpush1.msra.mxu0 0.0
    %407 = vmatprep.subr.mxu0 0.0
    %408 = vmatpush1.msra.mxu0 0.0
    %409 = vmatprep.subr.mxu0 0.0
    %410 = vmatpush1.msra.mxu0 0.0
    %411 = vmatprep.subr.mxu0 0.0
    %412 = vmatpush1.msra.mxu0 0.0
    %413 = vmatprep.subr.mxu0 0.0
    %414 = vmatpush1.msra.mxu0 0.0
    %415 = vmatprep.subr.mxu0 0.0
    %416 = vmatpush1.msra.mxu0 0.0
    %417 = vmatprep.subr.mxu0 0.0
    %418 = vmatpush1.msra.mxu0 0.0
    %419 = vmatprep.subr.mxu0 0.0
    %420 = vmatpush1.msra.mxu0 0.0
    %421 = vmatprep.subr.mxu0 0.0
    %422 = vmatpush1.msra.mxu0 0.0
    %423 = vmatprep.subr.mxu0 0.0
    %424 = vmatpush1.msra.mxu0 0.0
    %425 = vmatprep.subr.mxu0 0.0
    %426 = vmatpush1.msra.mxu0 0.0
    %427 = vmatprep.subr.mxu0 0.0
    %428 = vmatpush1.msra.mxu0 0.0
    %429 = vmatprep.subr.mxu0 0.0
    %430 = vmatpush1.msra.mxu0 0.0
    %431 = vmatprep.subr.mxu0 0.0
    %432 = vmatpush1.msra.mxu0 0.0
    %433 = vmatprep.subr.mxu0 0.0
    %434 = vmatpush1.msra.mxu0 0.0
    %435 = vmatprep.mubr.f32.mxu0 0.0
    %436 = vmatmul.mubr.f32.gmra.mrb[0].mxu0 %v369
    %v437 = vpop.f32.mrb[0].mxu0
    %v438 = vadd.f32 0.0, %v437
    %v439 = vpop.f32.mrb[0].mxu0
    %440 = vdwg.mxu0
    %v441 = vadd.f32 %v366, %v438
    %v442 = vxor.u32 %v441, 2147483648
    %v443 = vmul.f32 %v442, 1.442695
    %v444 = vpow.pop %v443
    %v445 = vadd.f32 %v444, 1.0
    %v446 = vrcp.pop %v445
    %v447 = vmul.f32 1.0, %v446
    %v448 = vtanh.pop %v441
    %v449 = vld [vmem:[#allocation2] sm:$0x3]
    %v450 = vmul.f32 %v449, %v447
    %452 = vrot.lane.b32.xlu0 %v448, 96
    %v453 = vpop.permute.xlu0 %452
    %v455 = vmul.f32 %v447, %v453
    %457 = vrot.lane.b32.xlu0 %v455, 96
    %v458 = vpop.permute.xlu0 %457
    %v460 = vadd.f32 %v450, %v458
    %v461 = vtanh.pop %v460
    %463 = vrot.lane.b32.xlu0 %v461, 96
    %v464 = vpop.permute.xlu0 %463
    %v466 = vmul.f32 %v447, %v464
    %467 = vst.msk [vmem:[#allocation2] sm:$0x3] %vm137, %v460
    %469 = vrot.lane.b32.xlu0 %v466, 32
    %v470 = vpop.permute.xlu0 %469
    %472 = vst.msk [vmem:[#allocation3] sm:$0x3] %vm137, %v470
    %s473 = scalar_lea.vmem %s4, 6
    %474 = vst.msk [vmem:[%s473] sm:$0x3] %vm137, %v470
    %s475 = scalar_lea.vmem %s0, 8
    %v476 = vld [vmem:[%s475] sm:$0x3]
    %v477 = vld [vmem:[#allocation3] sm:$0x3]
    %v479 = vsel %vm37, %v477, 0
    %481 = vmatprep.subr.mxu0 0.0
    %482 = vmatpush1.msra.mxu0 %v31
    %483 = vmatprep.subr.mxu0 0.0
    %484 = vmatpush1.msra.mxu0 %v32
    %485 = vmatprep.subr.mxu0 0.0
    %486 = vmatpush1.msra.mxu0 %v33
    %487 = vmatprep.subr.mxu0 0.0
    %488 = vmatpush1.msra.mxu0 %v34
    %489 = vmatprep.subr.mxu0 0.0
    %490 = vmatpush1.msra.mxu0 0.0
    %491 = vmatprep.subr.mxu0 0.0
    %492 = vmatpush1.msra.mxu0 0.0
    %493 = vmatprep.subr.mxu0 0.0
    %494 = vmatpush1.msra.mxu0 0.0
    %495 = vmatprep.subr.mxu0 0.0
    %496 = vmatpush1.msra.mxu0 0.0
    %497 = vmatprep.subr.mxu0 0.0
    %498 = vmatpush1.msra.mxu0 0.0
    %499 = vmatprep.subr.mxu0 0.0
    %500 = vmatpush1.msra.mxu0 0.0
    %501 = vmatprep.subr.mxu0 0.0
    %502 = vmatpush1.msra.mxu0 0.0
    %503 = vmatprep.subr.mxu0 0.0
    %504 = vmatpush1.msra.mxu0 0.0
    %505 = vmatprep.subr.mxu0 0.0
    %506 = vmatpush1.msra.mxu0 0.0
    %507 = vmatprep.subr.mxu0 0.0
    %508 = vmatpush1.msra.mxu0 0.0
    %509 = vmatprep.subr.mxu0 0.0
    %510 = vmatpush1.msra.mxu0 0.0
    %511 = vmatprep.subr.mxu0 0.0
    %512 = vmatpush1.msra.mxu0 0.0
    %513 = vmatprep.subr.mxu0 0.0
    %514 = vmatpush1.msra.mxu0 0.0
    %515 = vmatprep.subr.mxu0 0.0
    %516 = vmatpush1.msra.mxu0 0.0
    %517 = vmatprep.subr.mxu0 0.0
    %518 = vmatpush1.msra.mxu0 0.0
    %519 = vmatprep.subr.mxu0 0.0
    %520 = vmatpush1.msra.mxu0 0.0
    %521 = vmatprep.subr.mxu0 0.0
    %522 = vmatpush1.msra.mxu0 0.0
    %523 = vmatprep.subr.mxu0 0.0
    %524 = vmatpush1.msra.mxu0 0.0
    %525 = vmatprep.subr.mxu0 0.0
    %526 = vmatpush1.msra.mxu0 0.0
    %527 = vmatprep.subr.mxu0 0.0
    %528 = vmatpush1.msra.mxu0 0.0
    %529 = vmatprep.subr.mxu0 0.0
    %530 = vmatpush1.msra.mxu0 0.0
    %531 = vmatprep.subr.mxu0 0.0
    %532 = vmatpush1.msra.mxu0 0.0
    %533 = vmatprep.subr.mxu0 0.0
    %534 = vmatpush1.msra.mxu0 0.0
    %535 = vmatprep.subr.mxu0 0.0
    %536 = vmatpush1.msra.mxu0 0.0
    %537 = vmatprep.subr.mxu0 0.0
    %538 = vmatpush1.msra.mxu0 0.0
    %539 = vmatprep.subr.mxu0 0.0
    %540 = vmatpush1.msra.mxu0 0.0
    %541 = vmatprep.subr.mxu0 0.0
    %542 = vmatpush1.msra.mxu0 0.0
    %543 = vmatprep.subr.mxu0 0.0
    %544 = vmatpush1.msra.mxu0 0.0
    %545 = vmatprep.mubr.f32.mxu0 0.0
    %546 = vmatmul.mubr.f32.gmra.mrb[0].mxu0 %v479
    %v547 = vpop.f32.mrb[0].mxu0
    %v548 = vadd.f32 0.0, %v547
    %v549 = vpop.f32.mrb[0].mxu0
    %550 = vdwg.mxu0
    %v551 = vadd.f32 %v476, %v548
    %v552 = vxor.u32 %v551, 2147483648
    %v553 = vmul.f32 %v552, 1.442695
    %v554 = vpow.pop %v553
    %v555 = vadd.f32 %v554, 1.0
    %v556 = vrcp.pop %v555
    %v557 = vmul.f32 1.0, %v556
    %v558 = vtanh.pop %v551
    %v559 = vld [vmem:[#allocation2] sm:$0x3]
    %v560 = vmul.f32 %v559, %v557
    %562 = vrot.lane.b32.xlu0 %v558, 96
    %v563 = vpop.permute.xlu0 %562
    %v565 = vmul.f32 %v557, %v563
    %567 = vrot.lane.b32.xlu0 %v565, 96
    %v568 = vpop.permute.xlu0 %567
    %v570 = vadd.f32 %v560, %v568
    %v571 = vtanh.pop %v570
    %573 = vrot.lane.b32.xlu0 %v571, 96
    %v574 = vpop.permute.xlu0 %573
    %v576 = vmul.f32 %v557, %v574
    %577 = vst.msk [vmem:[#allocation2] sm:$0x3] %vm137, %v570
    %579 = vrot.lane.b32.xlu0 %v576, 32
    %v580 = vpop.permute.xlu0 %579
    %582 = vst.msk [vmem:[#allocation3] sm:$0x3] %vm137, %v580
    %s583 = scalar_lea.vmem %s4, 8
    %584 = vst.msk [vmem:[%s583] sm:$0x3] %vm137, %v580
    %s585 = scalar_lea.vmem %s0, 10
    %v586 = vld [vmem:[%s585] sm:$0x3]
    %v587 = vld [vmem:[#allocation3] sm:$0x3]
    %v589 = vsel %vm37, %v587, 0
    %591 = vmatprep.subr.mxu0 0.0
    %592 = vmatpush1.msra.mxu0 %v31
    %593 = vmatprep.subr.mxu0 0.0
    %594 = vmatpush1.msra.mxu0 %v32
    %595 = vmatprep.subr.mxu0 0.0
    %596 = vmatpush1.msra.mxu0 %v33
    %597 = vmatprep.subr.mxu0 0.0
    %598 = vmatpush1.msra.mxu0 %v34
    %599 = vmatprep.subr.mxu0 0.0
    %600 = vmatpush1.msra.mxu0 0.0
    %601 = vmatprep.subr.mxu0 0.0
    %602 = vmatpush1.msra.mxu0 0.0
    %603 = vmatprep.subr.mxu0 0.0
    %604 = vmatpush1.msra.mxu0 0.0
    %605 = vmatprep.subr.mxu0 0.0
    %606 = vmatpush1.msra.mxu0 0.0
    %607 = vmatprep.subr.mxu0 0.0
    %608 = vmatpush1.msra.mxu0 0.0
    %609 = vmatprep.subr.mxu0 0.0
    %610 = vmatpush1.msra.mxu0 0.0
    %611 = vmatprep.subr.mxu0 0.0
    %612 = vmatpush1.msra.mxu0 0.0
    %613 = vmatprep.subr.mxu0 0.0
    %614 = vmatpush1.msra.mxu0 0.0
    %615 = vmatprep.subr.mxu0 0.0
    %616 = vmatpush1.msra.mxu0 0.0
    %617 = vmatprep.subr.mxu0 0.0
    %618 = vmatpush1.msra.mxu0 0.0
    %619 = vmatprep.subr.mxu0 0.0
    %620 = vmatpush1.msra.mxu0 0.0
    %621 = vmatprep.subr.mxu0 0.0
    %622 = vmatpush1.msra.mxu0 0.0
    %623 = vmatprep.subr.mxu0 0.0
    %624 = vmatpush1.msra.mxu0 0.0
    %625 = vmatprep.subr.mxu0 0.0
    %626 = vmatpush1.msra.mxu0 0.0
    %627 = vmatprep.subr.mxu0 0.0
    %628 = vmatpush1.msra.mxu0 0.0
    %629 = vmatprep.subr.mxu0 0.0
    %630 = vmatpush1.msra.mxu0 0.0
    %631 = vmatprep.subr.mxu0 0.0
    %632 = vmatpush1.msra.mxu0 0.0
    %633 = vmatprep.subr.mxu0 0.0
    %634 = vmatpush1.msra.mxu0 0.0
    %635 = vmatprep.subr.mxu0 0.0
    %636 = vmatpush1.msra.mxu0 0.0
    %637 = vmatprep.subr.mxu0 0.0
    %638 = vmatpush1.msra.mxu0 0.0
    %639 = vmatprep.subr.mxu0 0.0
    %640 = vmatpush1.msra.mxu0 0.0
    %641 = vmatprep.subr.mxu0 0.0
    %642 = vmatpush1.msra.mxu0 0.0
    %643 = vmatprep.subr.mxu0 0.0
    %644 = vmatpush1.msra.mxu0 0.0
    %645 = vmatprep.subr.mxu0 0.0
    %646 = vmatpush1.msra.mxu0 0.0
    %647 = vmatprep.subr.mxu0 0.0
    %648 = vmatpush1.msra.mxu0 0.0
    %649 = vmatprep.subr.mxu0 0.0
    %650 = vmatpush1.msra.mxu0 0.0
    %651 = vmatprep.subr.mxu0 0.0
    %652 = vmatpush1.msra.mxu0 0.0
    %653 = vmatprep.subr.mxu0 0.0
    %654 = vmatpush1.msra.mxu0 0.0
    %655 = vmatprep.mubr.f32.mxu0 0.0
    %656 = vmatmul.mubr.f32.gmra.mrb[0].mxu0 %v589
    %v657 = vpop.f32.mrb[0].mxu0
    %v658 = vadd.f32 0.0, %v657
    %v659 = vpop.f32.mrb[0].mxu0
    %660 = vdwg.mxu0
    %v661 = vadd.f32 %v586, %v658
    %v662 = vxor.u32 %v661, 2147483648
    %v663 = vmul.f32 %v662, 1.442695
    %v664 = vpow.pop %v663
    %v665 = vadd.f32 %v664, 1.0
    %v666 = vrcp.pop %v665
    %v667 = vmul.f32 1.0, %v666
    %v668 = vtanh.pop %v661
    %v669 = vld [vmem:[#allocation2] sm:$0x3]
    %v670 = vmul.f32 %v669, %v667
    %672 = vrot.lane.b32.xlu0 %v668, 96
    %v673 = vpop.permute.xlu0 %672
    %v675 = vmul.f32 %v667, %v673
    %677 = vrot.lane.b32.xlu0 %v675, 96
    %v678 = vpop.permute.xlu0 %677
    %v680 = vadd.f32 %v670, %v678
    %v681 = vtanh.pop %v680
    %683 = vrot.lane.b32.xlu0 %v681, 96
    %v684 = vpop.permute.xlu0 %683
    %v686 = vmul.f32 %v667, %v684
    %687 = vst.msk [vmem:[#allocation2] sm:$0x3] %vm137, %v680
    %689 = vrot.lane.b32.xlu0 %v686, 32
    %v690 = vpop.permute.xlu0 %689
    %692 = vst.msk [vmem:[#allocation3] sm:$0x3] %vm137, %v690
    %s693 = scalar_lea.vmem %s4, 10
    %694 = vst.msk [vmem:[%s693] sm:$0x3] %vm137, %v690
    %s695 = scalar_lea.vmem %s0, 12
    %v696 = vld [vmem:[%s695] sm:$0x3]
    %v697 = vld [vmem:[#allocation3] sm:$0x3]
    %v699 = vsel %vm37, %v697, 0
    %701 = vmatprep.subr.mxu0 0.0
    %702 = vmatpush1.msra.mxu0 %v31
    %703 = vmatprep.subr.mxu0 0.0
    %704 = vmatpush1.msra.mxu0 %v32
    %705 = vmatprep.subr.mxu0 0.0
    %706 = vmatpush1.msra.mxu0 %v33
    %707 = vmatprep.subr.mxu0 0.0
    %708 = vmatpush1.msra.mxu0 %v34
    %709 = vmatprep.subr.mxu0 0.0
    %710 = vmatpush1.msra.mxu0 0.0
    %711 = vmatprep.subr.mxu0 0.0
    %712 = vmatpush1.msra.mxu0 0.0
    %713 = vmatprep.subr.mxu0 0.0
    %714 = vmatpush1.msra.mxu0 0.0
    %715 = vmatprep.subr.mxu0 0.0
    %716 = vmatpush1.msra.mxu0 0.0
    %717 = vmatprep.subr.mxu0 0.0
    %718 = vmatpush1.msra.mxu0 0.0
    %719 = vmatprep.subr.mxu0 0.0
    %720 = vmatpush1.msra.mxu0 0.0
    %721 = vmatprep.subr.mxu0 0.0
    %722 = vmatpush1.msra.mxu0 0.0
    %723 = vmatprep.subr.mxu0 0.0
    %724 = vmatpush1.msra.mxu0 0.0
    %725 = vmatprep.subr.mxu0 0.0
    %726 = vmatpush1.msra.mxu0 0.0
    %727 = vmatprep.subr.mxu0 0.0
    %728 = vmatpush1.msra.mxu0 0.0
    %729 = vmatprep.subr.mxu0 0.0
    %730 = vmatpush1.msra.mxu0 0.0
    %731 = vmatprep.subr.mxu0 0.0
    %732 = vmatpush1.msra.mxu0 0.0
    %733 = vmatprep.subr.mxu0 0.0
    %734 = vmatpush1.msra.mxu0 0.0
    %735 = vmatprep.subr.mxu0 0.0
    %736 = vmatpush1.msra.mxu0 0.0
    %737 = vmatprep.subr.mxu0 0.0
    %738 = vmatpush1.msra.mxu0 0.0
    %739 = vmatprep.subr.mxu0 0.0
    %740 = vmatpush1.msra.mxu0 0.0
    %741 = vmatprep.subr.mxu0 0.0
    %742 = vmatpush1.msra.mxu0 0.0
    %743 = vmatprep.subr.mxu0 0.0
    %744 = vmatpush1.msra.mxu0 0.0
    %745 = vmatprep.subr.mxu0 0.0
    %746 = vmatpush1.msra.mxu0 0.0
    %747 = vmatprep.subr.mxu0 0.0
    %748 = vmatpush1.msra.mxu0 0.0
    %749 = vmatprep.subr.mxu0 0.0
    %750 = vmatpush1.msra.mxu0 0.0
    %751 = vmatprep.subr.mxu0 0.0
    %752 = vmatpush1.msra.mxu0 0.0
    %753 = vmatprep.subr.mxu0 0.0
    %754 = vmatpush1.msra.mxu0 0.0
    %755 = vmatprep.subr.mxu0 0.0
    %756 = vmatpush1.msra.mxu0 0.0
    %757 = vmatprep.subr.mxu0 0.0
    %758 = vmatpush1.msra.mxu0 0.0
    %759 = vmatprep.subr.mxu0 0.0
    %760 = vmatpush1.msra.mxu0 0.0
    %761 = vmatprep.subr.mxu0 0.0
    %762 = vmatpush1.msra.mxu0 0.0
    %763 = vmatprep.subr.mxu0 0.0
    %764 = vmatpush1.msra.mxu0 0.0
    %765 = vmatprep.mubr.f32.mxu0 0.0
    %766 = vmatmul.mubr.f32.gmra.mrb[0].mxu0 %v699
    %v767 = vpop.f32.mrb[0].mxu0
    %v768 = vadd.f32 0.0, %v767
    %v769 = vpop.f32.mrb[0].mxu0
    %770 = vdwg.mxu0
    %v771 = vadd.f32 %v696, %v768
    %v772 = vxor.u32 %v771, 2147483648
    %v773 = vmul.f32 %v772, 1.442695
    %v774 = vpow.pop %v773
    %v775 = vadd.f32 %v774, 1.0
    %v776 = vrcp.pop %v775
    %v777 = vmul.f32 1.0, %v776
    %v778 = vtanh.pop %v771
    %v779 = vld [vmem:[#allocation2] sm:$0x3]
    %v780 = vmul.f32 %v779, %v777
    %782 = vrot.lane.b32.xlu0 %v778, 96
    %v783 = vpop.permute.xlu0 %782
    %v785 = vmul.f32 %v777, %v783
    %787 = vrot.lane.b32.xlu0 %v785, 96
    %v788 = vpop.permute.xlu0 %787
    %v790 = vadd.f32 %v780, %v788
    %v791 = vtanh.pop %v790
    %793 = vrot.lane.b32.xlu0 %v791, 96
    %v794 = vpop.permute.xlu0 %793
    %v796 = vmul.f32 %v777, %v794
    %797 = vst.msk [vmem:[#allocation2] sm:$0x3] %vm137, %v790
    %799 = vrot.lane.b32.xlu0 %v796, 32
    %v800 = vpop.permute.xlu0 %799
    %802 = vst.msk [vmem:[#allocation3] sm:$0x3] %vm137, %v800
    %s803 = scalar_lea.vmem %s4, 12
    %804 = vst.msk [vmem:[%s803] sm:$0x3] %vm137, %v800
    %s805 = scalar_lea.vmem %s0, 14
    %v806 = vld [vmem:[%s805] sm:$0x3]
    %v807 = vld [vmem:[#allocation3] sm:$0x3]
    %v809 = vsel %vm37, %v807, 0
    %811 = vmatprep.subr.mxu0 0.0
    %812 = vmatpush1.msra.mxu0 %v31
    %813 = vmatprep.subr.mxu0 0.0
    %814 = vmatpush1.msra.mxu0 %v32
    %815 = vmatprep.subr.mxu0 0.0
    %816 = vmatpush1.msra.mxu0 %v33
    %817 = vmatprep.subr.mxu0 0.0
    %818 = vmatpush1.msra.mxu0 %v34
    %819 = vmatprep.subr.mxu0 0.0
    %820 = vmatpush1.msra.mxu0 0.0
    %821 = vmatprep.subr.mxu0 0.0
    %822 = vmatpush1.msra.mxu0 0.0
    %823 = vmatprep.subr.mxu0 0.0
    %824 = vmatpush1.msra.mxu0 0.0
    %825 = vmatprep.subr.mxu0 0.0
    %826 = vmatpush1.msra.mxu0 0.0
    %827 = vmatprep.subr.mxu0 0.0
    %828 = vmatpush1.msra.mxu0 0.0
    %829 = vmatprep.subr.mxu0 0.0
    %830 = vmatpush1.msra.mxu0 0.0
    %831 = vmatprep.subr.mxu0 0.0
    %832 = vmatpush1.msra.mxu0 0.0
    %833 = vmatprep.subr.mxu0 0.0
    %834 = vmatpush1.msra.mxu0 0.0
    %835 = vmatprep.subr.mxu0 0.0
    %836 = vmatpush1.msra.mxu0 0.0
    %837 = vmatprep.subr.mxu0 0.0
    %838 = vmatpush1.msra.mxu0 0.0
    %839 = vmatprep.subr.mxu0 0.0
    %840 = vmatpush1.msra.mxu0 0.0
    %841 = vmatprep.subr.mxu0 0.0
    %842 = vmatpush1.msra.mxu0 0.0
    %843 = vmatprep.subr.mxu0 0.0
    %844 = vmatpush1.msra.mxu0 0.0
    %845 = vmatprep.subr.mxu0 0.0
    %846 = vmatpush1.msra.mxu0 0.0
    %847 = vmatprep.subr.mxu0 0.0
    %848 = vmatpush1.msra.mxu0 0.0
    %849 = vmatprep.subr.mxu0 0.0
    %850 = vmatpush1.msra.mxu0 0.0
    %851 = vmatprep.subr.mxu0 0.0
    %852 = vmatpush1.msra.mxu0 0.0
    %853 = vmatprep.subr.mxu0 0.0
    %854 = vmatpush1.msra.mxu0 0.0
    %855 = vmatprep.subr.mxu0 0.0
    %856 = vmatpush1.msra.mxu0 0.0
    %857 = vmatprep.subr.mxu0 0.0
    %858 = vmatpush1.msra.mxu0 0.0
    %859 = vmatprep.subr.mxu0 0.0
    %860 = vmatpush1.msra.mxu0 0.0
    %861 = vmatprep.subr.mxu0 0.0
    %862 = vmatpush1.msra.mxu0 0.0
    %863 = vmatprep.subr.mxu0 0.0
    %864 = vmatpush1.msra.mxu0 0.0
    %865 = vmatprep.subr.mxu0 0.0
    %866 = vmatpush1.msra.mxu0 0.0
    %867 = vmatprep.subr.mxu0 0.0
    %868 = vmatpush1.msra.mxu0 0.0
    %869 = vmatprep.subr.mxu0 0.0
    %870 = vmatpush1.msra.mxu0 0.0
    %871 = vmatprep.subr.mxu0 0.0
    %872 = vmatpush1.msra.mxu0 0.0
    %873 = vmatprep.subr.mxu0 0.0
    %874 = vmatpush1.msra.mxu0 0.0
    %875 = vmatprep.mubr.f32.mxu0 0.0
    %876 = vmatmul.mubr.f32.gmra.mrb[0].mxu0 %v809
    %v877 = vpop.f32.mrb[0].mxu0
    %v878 = vadd.f32 0.0, %v877
    %v879 = vpop.f32.mrb[0].mxu0
    %880 = vdwg.mxu0
    %v881 = vadd.f32 %v806, %v878
    %v882 = vxor.u32 %v881, 2147483648
    %v883 = vmul.f32 %v882, 1.442695
    %v884 = vpow.pop %v883
    %v885 = vadd.f32 %v884, 1.0
    %v886 = vrcp.pop %v885
    %v887 = vmul.f32 1.0, %v886
    %v888 = vtanh.pop %v881
    %v889 = vld [vmem:[#allocation2] sm:$0x3]
    %v890 = vmul.f32 %v889, %v887
    %892 = vrot.lane.b32.xlu0 %v888, 96
    %v893 = vpop.permute.xlu0 %892
    %v895 = vmul.f32 %v887, %v893
    %897 = vrot.lane.b32.xlu0 %v895, 96
    %v898 = vpop.permute.xlu0 %897
    %v900 = vadd.f32 %v890, %v898
    %v901 = vtanh.pop %v900
    %903 = vrot.lane.b32.xlu0 %v901, 96
    %v904 = vpop.permute.xlu0 %903
    %v906 = vmul.f32 %v887, %v904
    %907 = vst.msk [vmem:[#allocation2] sm:$0x3] %vm137, %v900
    %909 = vrot.lane.b32.xlu0 %v906, 32
    %v910 = vpop.permute.xlu0 %909
    %912 = vst.msk [vmem:[#allocation3] sm:$0x3] %vm137, %v910
    %s913 = scalar_lea.vmem %s4, 14
    %914 = vst.msk [vmem:[%s913] sm:$0x3] %vm137, %v910
    // Predicated region
    $region22: #{ptblm_forward.6} parent=1 // pred_check
      %p915 = pneg %p22
    $region23: #{ptblm_forward.6} parent=1 // pred_check_branch
      %917 = sbr.rel (%p915) target = $region25
    $region24: #{ptblm_forward.6} parent=1 // pred_region
      %v918 = vld [vmem:[#allocation2] sm:$0x3]
      %919 = vst.msk [vmem:[#allocation4] sm:$0x3] %vm137, %v918
      %v920 = vld [vmem:[#allocation3] sm:$0x3]
      %921 = vst.msk [vmem:[#allocation6] sm:$0x3] %vm137, %v920
    $region25: #{ptblm_forward.6} parent=1 // pred_fallthru
      _
    // Predicated region
    $region26: #{ptblm_forward.6} parent=1 // pred_check
      _
    $region27: #{ptblm_forward.6} parent=1 // pred_check_branch
      %923 = sbr.rel (0) target = $region29
    $region28: #{ptblm_forward.6} parent=1 // pred_region
      _
    $region29: #{ptblm_forward.6} parent=1 // pred_fallthru
      _
    // Predicated region
    $region30: #{ptblm_forward.6} parent=1 // pred_check
      _
    $region31: #{ptblm_forward.6} parent=1 // pred_check_branch
      %925 = sbr.rel (0) target = $region33
    $region32: #{ptblm_forward.6} parent=1 // pred_region
      %s927 = ssub.s32 32, 32
      %928 = vsyncadd [#allocation5], %s927
      %s930 = sshll.u32 [#allocation4], 4
      %s931 = int_to_ptr.vmem [resolvable:$true] %s930
      %933 = dma.vmem_to_hbm [thread:$0]  %s931, 32, %s5, [#allocation5]
    $region33: #{ptblm_forward.6} parent=1 // pred_fallthru
      _
    // Predicated region
    $region34: #{ptblm_forward.6} parent=1 // pred_check
      _
    $region35: #{ptblm_forward.6} parent=1 // pred_check_branch
      %935 = sbr.rel (0) target = $region37
    $region36: #{ptblm_forward.6} parent=1 // pred_region
      %s937 = ssub.s32 32, 32
      %938 = vsyncadd [#allocation7], %s937
      %s940 = sshll.u32 [#allocation6], 4
      %s941 = int_to_ptr.vmem [resolvable:$true] %s940
      %943 = dma.vmem_to_hbm [thread:$0]  %s941, 32, %s6, [#allocation7]
    $region37: #{ptblm_forward.6} parent=1 // pred_fallthru
      _
    // Predicated region
    $region38: #{ptblm_forward.6} parent=1 // pred_check
      _
    $region39: #{ptblm_forward.6} parent=1 // pred_check_branch
      %945 = sbr.rel (0) target = $region41
    $region40: #{ptblm_forward.6} parent=1 // pred_region
      _
    $region41: #{ptblm_forward.6} parent=1 // pred_fallthru
      _
    // Predicated region
    $region42: #{ptblm_forward.6} parent=1 // pred_check
      _
    $region43: #{ptblm_forward.6} parent=1 // pred_check_branch
      %947 = sbr.rel (0) target = $region45
    $region44: #{ptblm_forward.6} parent=1 // pred_region
      %948 = dma.done [#allocation5], 32
    $region45: #{ptblm_forward.6} parent=1 // pred_fallthru
      _
    // Predicated region
    $region46: #{ptblm_forward.6} parent=1 // pred_check
      _
    $region47: #{ptblm_forward.6} parent=1 // pred_check_branch
      %950 = sbr.rel (0) target = $region49
    $region48: #{ptblm_forward.6} parent=1 // pred_region
      %951 = dma.done [#allocation7], 32
    $region49: #{ptblm_forward.6} parent=1 // pred_fallthru
      _
    %952 = vsyncpa [#allocation5], 1
    %953 = vsyncpa [#allocation7], 1

</llo_original>
